<compile_context>
chip_gen: v6e
topology: v6e:2x2x1
jax: 0.10.0
libtpu: 0.0.40
codegen_flags: <defaults>
</compile_context>

<pallas_src>
import functools
import math

import jax
import jax.numpy as jnp
from jax import lax
from jax.experimental import pallas as pl
from jax.experimental.pallas import tpu as pltpu


def _fused_mha_pool_kernel(*refs, n_head, d_k, d_v, inv_temperature, has_mask):
    if has_mask:
        (q_ref, k_ref, mask_ref, wq_ref, bq_ref, wkv_ref, bkv_ref,
         out_ref, attn_ref) = refs
    else:
        (q_ref, k_ref, wq_ref, bq_ref, wkv_ref, bkv_ref,
         out_ref, attn_ref) = refs
        mask_ref = None

    tb = q_ref.shape[0]          # batch tile
    l = k_ref.shape[1]           # sequence length
    d_kin = k_ref.shape[2]
    H = n_head
    prec = lax.Precision.HIGHEST
    f32 = jnp.float32

    # ---- Projections for ALL heads at once (two MXU matmuls per step). ----
    # 1/temperature is folded into the (small) projected q.
    qh = jnp.dot(q_ref[...], wq_ref[...], precision=prec,
                 preferred_element_type=f32) + bq_ref[...]
    qh = qh * inv_temperature                                  # (TB, H*d_k) f32

    k_flat = k_ref[...].reshape(tb * l, d_kin)
    kv = jnp.dot(k_flat, wkv_ref[...], precision=prec,
                 preferred_element_type=f32) + bkv_ref[...]    # (TB*l, H*(d_k+d_v))
    kv = kv.reshape(tb, l, H * (d_k + d_v))
    kh = kv[:, :, : H * d_k]                                   # (TB, l, H*d_k)
    vh = kv[:, :, H * d_k:]                                    # (TB, l, H*d_v)

    if has_mask:
        masked = mask_ref[...] > 0.5                           # (TB, l) bool

    # ---- Tiny per-head score / softmax / pool (VPU mul + lane/sublane reduce). ----
    outs = []
    for h in range(H):
        q_h = qh[:, h * d_k:(h + 1) * d_k]                     # (TB, d_k)
        k_h = kh[:, :, h * d_k:(h + 1) * d_k]                  # (TB, l, d_k)
        v_h = vh[:, :, h * d_v:(h + 1) * d_v]                  # (TB, l, d_v)

        # scores[b, j] = sum_d q_h[b, d] * k_h[b, j, d]
        s_h = jnp.sum(q_h[:, None, :] * k_h, axis=2)           # (TB, l)
        if has_mask:
            s_h = jnp.where(masked, -jnp.inf, s_h)

        # Numerically stable softmax over l (lane axis), exact divide.
        m = jnp.max(s_h, axis=1, keepdims=True)
        e = jnp.exp(s_h - m)
        denom = jnp.sum(e, axis=1, keepdims=True)
        a_h = e / denom                                        # (TB, l)

        attn_ref[h] = a_h.astype(attn_ref.dtype)

        # out[b, d] = sum_j a_h[b, j] * v_h[b, j, d]
        o_h = jnp.sum(a_h[:, :, None] * v_h, axis=1)           # (TB, d_v)
        outs.append(o_h)

    # Single lane-dense store: all heads packed along the lane dimension.
    out_ref[...] = jnp.concatenate(outs, axis=-1).astype(out_ref.dtype)


def pack_attn_pool_params(params, compute_dtype=jnp.float32):
    """One-time packing (hoisted out of the per-call path): fuse wk/wv and bk/bv
    so the k tile is projected with a single wide-N MXU matmul."""
    return {
        "wq": params["wq"].astype(compute_dtype),
        "bq": params["bq"].astype(jnp.float32),
        "wkv": jnp.concatenate([params["wk"], params["wv"]],
                               axis=1).astype(compute_dtype),
        "bkv": jnp.concatenate([params["bk"], params["bv"]],
                               axis=1).astype(jnp.float32),
    }


def _pick_batch_tile(b):
    if b <= 8:
        return b
    for tb in (128, 64, 32, 16, 8):
        if tb <= b:
            return tb
    return b


def multihead_att_pool(q, k, packed, n_head, mask=None,
                       compute_dtype=jnp.float32):
    """q: (b, d_q), k: (b, l, d_kin), mask: optional bool (b, l).
    Returns (out (b, H*d_v), attn (H*b, l)) — same layout as the PyTorch module."""
    b, d_q = q.shape
    _, l, d_kin = k.shape
    H = n_head
    d_k = packed["wq"].shape[1] // H
    d_v = (packed["wkv"].shape[1] - H * d_k) // H

    inv_temperature = 1.0 / math.sqrt(float(d_k))
    TB = _pick_batch_tile(b)
    grid = (pl.cdiv(b, TB),)
    has_mask = mask is not None

    q_in = q.astype(compute_dtype)
    k_in = k.astype(compute_dtype)

    in_specs = [
        pl.BlockSpec((TB, d_q), lambda i: (i, 0)),           # q
        pl.BlockSpec((TB, l, d_kin), lambda i: (i, 0, 0)),   # k
    ]
    inputs = [q_in, k_in]
    if has_mask:
        in_specs.append(pl.BlockSpec((TB, l), lambda i: (i, 0)))
        inputs.append(mask.astype(jnp.float32))
    in_specs += [
        pl.BlockSpec((d_q, H * d_k), lambda i: (0, 0)),             # wq (resident)
        pl.BlockSpec((1, H * d_k), lambda i: (0, 0)),               # bq
        pl.BlockSpec((d_kin, H * (d_k + d_v)), lambda i: (0, 0)),   # wkv (resident)
        pl.BlockSpec((1, H * (d_k + d_v)), lambda i: (0, 0)),       # bkv
    ]
    inputs += [packed["wq"], packed["bq"], packed["wkv"], packed["bkv"]]

    out_specs = (
        # out laid out directly as (b, H*d_v): lane-dense, free head merge.
        pl.BlockSpec((TB, H * d_v), lambda i: (i, 0)),
        # attn laid out (H, b, l): reshape to (H*b, l) matches PyTorch.
        pl.BlockSpec((H, TB, l), lambda i: (0, i, 0)),
    )
    out_shape = (
        jax.ShapeDtypeStruct((b, H * d_v), jnp.float32),
        jax.ShapeDtypeStruct((H, b, l), jnp.float32),
    )

    # Explicit VMEM budget from the resident/streamed block sizes (x2 double
    # buffering + headroom), capped below v7x's 64 MiB physical VMEM.
    isz = jnp.dtype(compute_dtype).itemsize
    blk_bytes = (TB * d_q * isz + TB * l * d_kin * isz
                 + d_q * H * d_k * isz + d_kin * H * (d_k + d_v) * isz
                 + (H * d_k + H * (d_k + d_v)) * 4
                 + TB * H * d_v * 4 + H * TB * l * 4
                 + (TB * l * 4 if has_mask else 0))
    vmem_limit_bytes = int(min(32 * 1024 * 1024,
                               max(8 * 1024 * 1024, 6 * blk_bytes)))

    kernel = functools.partial(
        _fused_mha_pool_kernel,
        n_head=H, d_k=d_k, d_v=d_v,
        inv_temperature=inv_temperature, has_mask=has_mask)

    out, attn3 = pl.pallas_call(
        kernel,
        out_shape=out_shape,
        grid=grid,
        in_specs=in_specs,
        out_specs=out_specs,
        compiler_params=pltpu.CompilerParams(
            dimension_semantics=("parallel",),
            vmem_limit_bytes=vmem_limit_bytes),
    )(*inputs)

    attn = attn3.reshape(H * b, l)   # free metadata reshape
    return out, attn


def _reference(q, k, params, n_head, mask=None):
    """Pure-JAX reference mirroring the PyTorch forward (eval mode)."""
    b, _ = q.shape
    _, l, d_kin = k.shape
    H = n_head
    d_k = params["wq"].shape[1] // H
    d_v = params["wv"].shape[1] // H
    prec = lax.Precision.HIGHEST
    qs = jnp.dot(q, params["wq"], precision=prec) + params["bq"]
    ks = jnp.dot(k.reshape(b * l, d_kin), params["wk"], precision=prec) + params["bk"]
    vs = jnp.dot(k.reshape(b * l, d_kin), params["wv"], precision=prec) + params["bv"]
    qs = qs.reshape(b, H, d_k).transpose(1, 0, 2).reshape(H * b, d_k)
    ks = ks.reshape(b, l, H, d_k).transpose(2, 0, 1, 3).reshape(H * b, l, d_k)
    vs = vs.reshape(b, l, H, d_v).transpose(2, 0, 1, 3).reshape(H * b, l, d_v)
    scores = jnp.sum(qs[:, None, :] * ks, axis=2) / (float(d_k) ** 0.5)
    if mask is not None:
        scores = jnp.where(jnp.tile(mask, (H, 1)), -jnp.inf, scores)
    attn = jax.nn.softmax(scores, axis=1)
    out = jnp.sum(attn[:, :, None] * vs, axis=1)
    out = out.reshape(H, b, d_v).transpose(1, 0, 2).reshape(b, H * d_v)
    return out, attn


if __name__ == "__main__":
    key = jax.random.PRNGKey(0)
    b, l = 2, 8
    n_head = 4
    d_q_original = 32
    d_k_original = 32
    d_k = d_k_original // n_head   # 8
    d_v = d_k_original // n_head   # 8

    ks_ = jax.random.split(key, 8)
    params = {
        "wq": (jax.random.normal(ks_[0], (d_q_original, n_head * d_k))
               * math.sqrt(2.0 / (d_q_original + d_k))).astype(jnp.float32),
        "bq": (jax.random.normal(ks_[1], (1, n_head * d_k)) * 0.01).astype(jnp.float32),
        "wk": (jax.random.normal(ks_[2], (d_k_original, n_head * d_k))
               * math.sqrt(2.0 / (d_k_original + d_k))).astype(jnp.float32),
        "bk": (jax.random.normal(ks_[3], (1, n_head * d_k)) * 0.01).astype(jnp.float32),
        "wv": (jax.random.normal(ks_[4], (d_k_original, n_head * d_v))
               * math.sqrt(2.0 / (d_k_original + d_v))).astype(jnp.float32),
        "bv": (jax.random.normal(ks_[5], (1, n_head * d_v)) * 0.01).astype(jnp.float32),
    }
    q = jax.random.normal(ks_[6], (b, d_q_original), jnp.float32)
    k = jax.random.normal(ks_[7], (b, l, d_k_original), jnp.float32)

    # One-time parameter packing (hoisted out of the per-call path).
    packed = pack_attn_pool_params(params)

    # ---- mask=None path (matches PyTorch default call) ----
    out, attn = multihead_att_pool(q, k, packed, n_head)
    jax.block_until_ready((out, attn))
    out_ref, attn_ref = _reference(q, k, params, n_head)
    assert out.shape == (b, n_head * d_v)
    assert attn.shape == (n_head * b, l)
    assert jnp.allclose(out, out_ref, atol=1e-3, rtol=1e-3)
    assert jnp.allclose(attn, attn_ref, atol=1e-3, rtol=1e-3)

    # ---- optional boolean mask path (masked_fill with -inf before softmax) ----
    mask = jnp.array([[False, False, False, False, False, True, True, True],
                      [False, False, False, False, False, False, False, False]])
    out_m, attn_m = multihead_att_pool(q, k, packed, n_head, mask=mask)
    jax.block_until_ready((out_m, attn_m))
    out_mref, attn_mref = _reference(q, k, params, n_head, mask=mask)
    assert jnp.allclose(out_m, out_mref, atol=1e-3, rtol=1e-3)
    assert jnp.allclose(attn_m, attn_mref, atol=1e-3, rtol=1e-3)

    print("KERNEL_OK")
</pallas_src>

<mosaic_0001>
module attributes {stable_mosaic.version = 11 : i64} {
  func.func @_fused_mha_pool_kernel(%arg0: i32, %arg1: memref<2x32xf32, #tpu.memory_space<vmem>>, %arg2: memref<2x8x32xf32, #tpu.memory_space<vmem>>, %arg3: memref<32x32xf32, #tpu.memory_space<vmem>>, %arg4: memref<1x32xf32, #tpu.memory_space<vmem>>, %arg5: memref<32x64xf32, #tpu.memory_space<vmem>>, %arg6: memref<1x64xf32, #tpu.memory_space<vmem>>, %arg7: memref<2x32xf32, #tpu.memory_space<vmem>>, %arg8: memref<4x2x8xf32, #tpu.memory_space<vmem>>) attributes {dimension_semantics = [#tpu.dimension_semantics<parallel>], iteration_bounds = array<i64: 1>, scalar_prefetch = 0 : i64, scratch_operands = 0 : i64, tpu.core_type = #tpu.core_type<tc>, window_params = [{transform_indices = @transform_0, window_bounds = array<i64: 2, 32>}, {transform_indices = @transform_1, window_bounds = array<i64: 2, 8, 32>}, {pipeline_mode = #tpu.pipeline_mode<synchronous>, transform_indices = @transform_2, window_bounds = array<i64: 32, 32>}, {pipeline_mode = #tpu.pipeline_mode<synchronous>, transform_indices = @transform_3, window_bounds = array<i64: 1, 32>}, {pipeline_mode = #tpu.pipeline_mode<synchronous>, transform_indices = @transform_4, window_bounds = array<i64: 32, 64>}, {pipeline_mode = #tpu.pipeline_mode<synchronous>, transform_indices = @transform_5, window_bounds = array<i64: 1, 64>}, {transform_indices = @transform_6, window_bounds = array<i64: 2, 32>}, {transform_indices = @transform_7, window_bounds = array<i64: 4, 2, 8>}]} {
    %c0 = arith.constant 0 : index
    %c0_0 = arith.constant 0 : index
    %0 = vector.load %arg1[%c0, %c0_0] : memref<2x32xf32, #tpu.memory_space<vmem>>, vector<2x32xf32>
    %c0_1 = arith.constant 0 : index
    %c0_2 = arith.constant 0 : index
    %1 = vector.load %arg3[%c0_1, %c0_2] : memref<32x32xf32, #tpu.memory_space<vmem>>, vector<32x32xf32>
    %cst = arith.constant dense<0.000000e+00> : vector<2x32xf32>
    %2 = tpu.matmul %0, %1, %cst {dimension_numbers = #tpu.dot_dimension_numbers<[1], [0], [0], [1], [0, 0, 1, 1], [], []>, precision = #tpu.contract_precision<fp32>} : vector<2x32xf32>, vector<32x32xf32>, vector<2x32xf32> -> vector<2x32xf32>
    %c0_3 = arith.constant 0 : index
    %c0_4 = arith.constant 0 : index
    %3 = vector.load %arg4[%c0_3, %c0_4] : memref<1x32xf32, #tpu.memory_space<vmem>>, vector<1x32xf32>
    %4 = vector.broadcast %3 : vector<1x32xf32> to vector<2x32xf32>
    %5 = arith.addf %2, %4 : vector<2x32xf32>
    %cst_5 = arith.constant 0.353553385 : f32
    %6 = vector.broadcast %cst_5 : f32 to vector<2x32xf32>
    %7 = arith.mulf %5, %6 : vector<2x32xf32>
    %c0_6 = arith.constant 0 : index
    %c0_7 = arith.constant 0 : index
    %c0_8 = arith.constant 0 : index
    %8 = vector.load %arg2[%c0_6, %c0_7, %c0_8] : memref<2x8x32xf32, #tpu.memory_space<vmem>>, vector<2x8x32xf32>
    %9 = vector.shape_cast %8 : vector<2x8x32xf32> to vector<16x32xf32>
    %c0_9 = arith.constant 0 : index
    %c0_10 = arith.constant 0 : index
    %10 = vector.load %arg5[%c0_9, %c0_10] : memref<32x64xf32, #tpu.memory_space<vmem>>, vector<32x64xf32>
    %cst_11 = arith.constant dense<0.000000e+00> : vector<16x64xf32>
    %11 = tpu.matmul %9, %10, %cst_11 {dimension_numbers = #tpu.dot_dimension_numbers<[1], [0], [0], [1], [0, 0, 1, 1], [], []>, precision = #tpu.contract_precision<fp32>} : vector<16x32xf32>, vector<32x64xf32>, vector<16x64xf32> -> vector<16x64xf32>
    %c0_12 = arith.constant 0 : index
    %c0_13 = arith.constant 0 : index
    %12 = vector.load %arg6[%c0_12, %c0_13] : memref<1x64xf32, #tpu.memory_space<vmem>>, vector<1x64xf32>
    %13 = vector.broadcast %12 : vector<1x64xf32> to vector<16x64xf32>
    %14 = arith.addf %11, %13 : vector<16x64xf32>
    %15 = vector.shape_cast %14 : vector<16x64xf32> to vector<2x8x64xf32>
    %16 = vector.extract_strided_slice %15 {offsets = [0, 0, 0], sizes = [2, 8, 32], strides = [1, 1, 1]} : vector<2x8x64xf32> to vector<2x8x32xf32>
    %17 = vector.extract_strided_slice %15 {offsets = [0, 0, 32], sizes = [2, 8, 32], strides = [1, 1, 1]} : vector<2x8x64xf32> to vector<2x8x32xf32>
    %18 = vector.extract_strided_slice %7 {offsets = [0, 0], sizes = [2, 8], strides = [1, 1]} : vector<2x32xf32> to vector<2x8xf32>
    %19 = vector.extract_strided_slice %16 {offsets = [0, 0, 0], sizes = [2, 8, 8], strides = [1, 1, 1]} : vector<2x8x32xf32> to vector<2x8x8xf32>
    %20 = vector.extract_strided_slice %17 {offsets = [0, 0, 0], sizes = [2, 8, 8], strides = [1, 1, 1]} : vector<2x8x32xf32> to vector<2x8x8xf32>
    %21 = vector.shape_cast %18 : vector<2x8xf32> to vector<2x1x8xf32>
    %22 = vector.broadcast %21 : vector<2x1x8xf32> to vector<2x8x8xf32>
    %23 = arith.mulf %22, %19 : vector<2x8x8xf32>
    %cst_14 = arith.constant dense<0.000000e+00> : vector<2x8xf32>
    %24 = vector.multi_reduction <add>, %23, %cst_14 [2] : vector<2x8x8xf32> to vector<2x8xf32>
    %cst_15 = arith.constant dense<0xFF800000> : vector<2xf32>
    %25 = vector.multi_reduction <maximumf>, %24, %cst_15 [1] : vector<2x8xf32> to vector<2xf32>
    %26 = vector.shape_cast %25 : vector<2xf32> to vector<2x1xf32>
    %27 = vector.broadcast %26 : vector<2x1xf32> to vector<2x8xf32>
    %28 = arith.subf %24, %27 : vector<2x8xf32>
    %29 = math.exp %28 : vector<2x8xf32>
    %cst_16 = arith.constant dense<0.000000e+00> : vector<2xf32>
    %30 = vector.multi_reduction <add>, %29, %cst_16 [1] : vector<2x8xf32> to vector<2xf32>
    %31 = vector.shape_cast %30 : vector<2xf32> to vector<2x1xf32>
    %32 = vector.broadcast %31 : vector<2x1xf32> to vector<2x8xf32>
    %33 = arith.divf %29, %32 : vector<2x8xf32>
    %c0_17 = arith.constant 0 : index
    %c0_18 = arith.constant 0 : index
    %c0_19 = arith.constant 0 : index
    %34 = vector.load %arg8[%c0_17, %c0_18, %c0_19] : memref<4x2x8xf32, #tpu.memory_space<vmem>>, vector<1x2x8xf32>
    %35 = vector.shape_cast %34 : vector<1x2x8xf32> to vector<2x8xf32>
    %36 = vector.shape_cast %33 : vector<2x8xf32> to vector<1x2x8xf32>
    tpu.vector_store %arg8[%c0_17, %c0_18, %c0_19], %36 {strides = array<i32>} : memref<4x2x8xf32, #tpu.memory_space<vmem>>, vector<1x2x8xf32>,
    %37 = vector.shape_cast %33 : vector<2x8xf32> to vector<2x8x1xf32>
    %38 = vector.broadcast %37 : vector<2x8x1xf32> to vector<2x8x8xf32>
    %39 = arith.mulf %38, %20 : vector<2x8x8xf32>
    %cst_20 = arith.constant dense<0.000000e+00> : vector<2x8xf32>
    %40 = vector.multi_reduction <add>, %39, %cst_20 [1] : vector<2x8x8xf32> to vector<2x8xf32>
    %41 = vector.extract_strided_slice %7 {offsets = [0, 8], sizes = [2, 8], strides = [1, 1]} : vector<2x32xf32> to vector<2x8xf32>
    %42 = vector.extract_strided_slice %16 {offsets = [0, 0, 8], sizes = [2, 8, 8], strides = [1, 1, 1]} : vector<2x8x32xf32> to vector<2x8x8xf32>
    %43 = vector.extract_strided_slice %17 {offsets = [0, 0, 8], sizes = [2, 8, 8], strides = [1, 1, 1]} : vector<2x8x32xf32> to vector<2x8x8xf32>
    %44 = vector.shape_cast %41 : vector<2x8xf32> to vector<2x1x8xf32>
    %45 = vector.broadcast %44 : vector<2x1x8xf32> to vector<2x8x8xf32>
    %46 = arith.mulf %45, %42 : vector<2x8x8xf32>
    %cst_21 = arith.constant dense<0.000000e+00> : vector<2x8xf32>
    %47 = vector.multi_reduction <add>, %46, %cst_21 [2] : vector<2x8x8xf32> to vector<2x8xf32>
    %cst_22 = arith.constant dense<0xFF800000> : vector<2xf32>
    %48 = vector.multi_reduction <maximumf>, %47, %cst_22 [1] : vector<2x8xf32> to vector<2xf32>
    %49 = vector.shape_cast %48 : vector<2xf32> to vector<2x1xf32>
    %50 = vector.broadcast %49 : vector<2x1xf32> to vector<2x8xf32>
    %51 = arith.subf %47, %50 : vector<2x8xf32>
    %52 = math.exp %51 : vector<2x8xf32>
    %cst_23 = arith.constant dense<0.000000e+00> : vector<2xf32>
    %53 = vector.multi_reduction <add>, %52, %cst_23 [1] : vector<2x8xf32> to vector<2xf32>
    %54 = vector.shape_cast %53 : vector<2xf32> to vector<2x1xf32>
    %55 = vector.broadcast %54 : vector<2x1xf32> to vector<2x8xf32>
    %56 = arith.divf %52, %55 : vector<2x8xf32>
    %c1 = arith.constant 1 : index
    %c0_24 = arith.constant 0 : index
    %c0_25 = arith.constant 0 : index
    %57 = vector.load %arg8[%c1, %c0_24, %c0_25] : memref<4x2x8xf32, #tpu.memory_space<vmem>>, vector<1x2x8xf32>
    %58 = vector.shape_cast %57 : vector<1x2x8xf32> to vector<2x8xf32>
    %59 = vector.shape_cast %56 : vector<2x8xf32> to vector<1x2x8xf32>
    tpu.vector_store %arg8[%c1, %c0_24, %c0_25], %59 {strides = array<i32>} : memref<4x2x8xf32, #tpu.memory_space<vmem>>, vector<1x2x8xf32>,
    %60 = vector.shape_cast %56 : vector<2x8xf32> to vector<2x8x1xf32>
    %61 = vector.broadcast %60 : vector<2x8x1xf32> to vector<2x8x8xf32>
    %62 = arith.mulf %61, %43 : vector<2x8x8xf32>
    %cst_26 = arith.constant dense<0.000000e+00> : vector<2x8xf32>
    %63 = vector.multi_reduction <add>, %62, %cst_26 [1] : vector<2x8x8xf32> to vector<2x8xf32>
    %64 = vector.extract_strided_slice %7 {offsets = [0, 16], sizes = [2, 8], strides = [1, 1]} : vector<2x32xf32> to vector<2x8xf32>
    %65 = vector.extract_strided_slice %16 {offsets = [0, 0, 16], sizes = [2, 8, 8], strides = [1, 1, 1]} : vector<2x8x32xf32> to vector<2x8x8xf32>
    %66 = vector.extract_strided_slice %17 {offsets = [0, 0, 16], sizes = [2, 8, 8], strides = [1, 1, 1]} : vector<2x8x32xf32> to vector<2x8x8xf32>
    %67 = vector.shape_cast %64 : vector<2x8xf32> to vector<2x1x8xf32>
    %68 = vector.broadcast %67 : vector<2x1x8xf32> to vector<2x8x8xf32>
    %69 = arith.mulf %68, %65 : vector<2x8x8xf32>
    %cst_27 = arith.constant dense<0.000000e+00> : vector<2x8xf32>
    %70 = vector.multi_reduction <add>, %69, %cst_27 [2] : vector<2x8x8xf32> to vector<2x8xf32>
    %cst_28 = arith.constant dense<0xFF800000> : vector<2xf32>
    %71 = vector.multi_reduction <maximumf>, %70, %cst_28 [1] : vector<2x8xf32> to vector<2xf32>
    %72 = vector.shape_cast %71 : vector<2xf32> to vector<2x1xf32>
    %73 = vector.broadcast %72 : vector<2x1xf32> to vector<2x8xf32>
    %74 = arith.subf %70, %73 : vector<2x8xf32>
    %75 = math.exp %74 : vector<2x8xf32>
    %cst_29 = arith.constant dense<0.000000e+00> : vector<2xf32>
    %76 = vector.multi_reduction <add>, %75, %cst_29 [1] : vector<2x8xf32> to vector<2xf32>
    %77 = vector.shape_cast %76 : vector<2xf32> to vector<2x1xf32>
    %78 = vector.broadcast %77 : vector<2x1xf32> to vector<2x8xf32>
    %79 = arith.divf %75, %78 : vector<2x8xf32>
    %c2 = arith.constant 2 : index
    %c0_30 = arith.constant 0 : index
    %c0_31 = arith.constant 0 : index
    %80 = vector.load %arg8[%c2, %c0_30, %c0_31] : memref<4x2x8xf32, #tpu.memory_space<vmem>>, vector<1x2x8xf32>
    %81 = vector.shape_cast %80 : vector<1x2x8xf32> to vector<2x8xf32>
    %82 = vector.shape_cast %79 : vector<2x8xf32> to vector<1x2x8xf32>
    tpu.vector_store %arg8[%c2, %c0_30, %c0_31], %82 {strides = array<i32>} : memref<4x2x8xf32, #tpu.memory_space<vmem>>, vector<1x2x8xf32>,
    %83 = vector.shape_cast %79 : vector<2x8xf32> to vector<2x8x1xf32>
    %84 = vector.broadcast %83 : vector<2x8x1xf32> to vector<2x8x8xf32>
    %85 = arith.mulf %84, %66 : vector<2x8x8xf32>
    %cst_32 = arith.constant dense<0.000000e+00> : vector<2x8xf32>
    %86 = vector.multi_reduction <add>, %85, %cst_32 [1] : vector<2x8x8xf32> to vector<2x8xf32>
    %87 = vector.extract_strided_slice %7 {offsets = [0, 24], sizes = [2, 8], strides = [1, 1]} : vector<2x32xf32> to vector<2x8xf32>
    %88 = vector.extract_strided_slice %16 {offsets = [0, 0, 24], sizes = [2, 8, 8], strides = [1, 1, 1]} : vector<2x8x32xf32> to vector<2x8x8xf32>
    %89 = vector.extract_strided_slice %17 {offsets = [0, 0, 24], sizes = [2, 8, 8], strides = [1, 1, 1]} : vector<2x8x32xf32> to vector<2x8x8xf32>
    %90 = vector.shape_cast %87 : vector<2x8xf32> to vector<2x1x8xf32>
    %91 = vector.broadcast %90 : vector<2x1x8xf32> to vector<2x8x8xf32>
    %92 = arith.mulf %91, %88 : vector<2x8x8xf32>
    %cst_33 = arith.constant dense<0.000000e+00> : vector<2x8xf32>
    %93 = vector.multi_reduction <add>, %92, %cst_33 [2] : vector<2x8x8xf32> to vector<2x8xf32>
    %cst_34 = arith.constant dense<0xFF800000> : vector<2xf32>
    %94 = vector.multi_reduction <maximumf>, %93, %cst_34 [1] : vector<2x8xf32> to vector<2xf32>
    %95 = vector.shape_cast %94 : vector<2xf32> to vector<2x1xf32>
    %96 = vector.broadcast %95 : vector<2x1xf32> to vector<2x8xf32>
    %97 = arith.subf %93, %96 : vector<2x8xf32>
    %98 = math.exp %97 : vector<2x8xf32>
    %cst_35 = arith.constant dense<0.000000e+00> : vector<2xf32>
    %99 = vector.multi_reduction <add>, %98, %cst_35 [1] : vector<2x8xf32> to vector<2xf32>
    %100 = vector.shape_cast %99 : vector<2xf32> to vector<2x1xf32>
    %101 = vector.broadcast %100 : vector<2x1xf32> to vector<2x8xf32>
    %102 = arith.divf %98, %101 : vector<2x8xf32>
    %c3 = arith.constant 3 : index
    %c0_36 = arith.constant 0 : index
    %c0_37 = arith.constant 0 : index
    %103 = vector.load %arg8[%c3, %c0_36, %c0_37] : memref<4x2x8xf32, #tpu.memory_space<vmem>>, vector<1x2x8xf32>
    %104 = vector.shape_cast %103 : vector<1x2x8xf32> to vector<2x8xf32>
    %105 = vector.shape_cast %102 : vector<2x8xf32> to vector<1x2x8xf32>
    tpu.vector_store %arg8[%c3, %c0_36, %c0_37], %105 {strides = array<i32>} : memref<4x2x8xf32, #tpu.memory_space<vmem>>, vector<1x2x8xf32>,
    %106 = vector.shape_cast %102 : vector<2x8xf32> to vector<2x8x1xf32>
    %107 = vector.broadcast %106 : vector<2x8x1xf32> to vector<2x8x8xf32>
    %108 = arith.mulf %107, %89 : vector<2x8x8xf32>
    %cst_38 = arith.constant dense<0.000000e+00> : vector<2x8xf32>
    %109 = vector.multi_reduction <add>, %108, %cst_38 [1] : vector<2x8x8xf32> to vector<2x8xf32>
    %110 = tpu.concatenate %40, %63, %86, %109 in 1 : vector<2x8xf32>, vector<2x8xf32>, vector<2x8xf32>, vector<2x8xf32> -> vector<2x32xf32>
    %c0_39 = arith.constant 0 : index
    %c0_40 = arith.constant 0 : index
    %111 = vector.load %arg7[%c0_39, %c0_40] : memref<2x32xf32, #tpu.memory_space<vmem>>, vector<2x32xf32>
    tpu.vector_store %arg7[%c0_39, %c0_40], %110 {strides = array<i32>} : memref<2x32xf32, #tpu.memory_space<vmem>>, vector<2x32xf32>,
    return
  }
  func.func @transform_0(%arg0: i32) -> (i32, i32) {
    %c0_i32 = arith.constant 0 : i32
    %c0_i32_0 = arith.constant 0 : i32
    return %arg0, %c0_i32 : i32, i32
  }
  func.func @transform_1(%arg0: i32) -> (i32, i32, i32) {
    %c0_i32 = arith.constant 0 : i32
    %c0_i32_0 = arith.constant 0 : i32
    %c0_i32_1 = arith.constant 0 : i32
    return %arg0, %c0_i32, %c0_i32_0 : i32, i32, i32
  }
  func.func @transform_2(%arg0: i32) -> (i32, i32) {
    %c0_i32 = arith.constant 0 : i32
    %c0_i32_0 = arith.constant 0 : i32
    %c0_i32_1 = arith.constant 0 : i32
    return %c0_i32, %c0_i32_0 : i32, i32
  }
  func.func @transform_3(%arg0: i32) -> (i32, i32) {
    %c0_i32 = arith.constant 0 : i32
    %c0_i32_0 = arith.constant 0 : i32
    %c0_i32_1 = arith.constant 0 : i32
    return %c0_i32, %c0_i32_0 : i32, i32
  }
  func.func @transform_4(%arg0: i32) -> (i32, i32) {
    %c0_i32 = arith.constant 0 : i32
    %c0_i32_0 = arith.constant 0 : i32
    %c0_i32_1 = arith.constant 0 : i32
    return %c0_i32, %c0_i32_0 : i32, i32
  }
  func.func @transform_5(%arg0: i32) -> (i32, i32) {
    %c0_i32 = arith.constant 0 : i32
    %c0_i32_0 = arith.constant 0 : i32
    %c0_i32_1 = arith.constant 0 : i32
    return %c0_i32, %c0_i32_0 : i32, i32
  }
  func.func @transform_6(%arg0: i32) -> (i32, i32) {
    %c0_i32 = arith.constant 0 : i32
    %c0_i32_0 = arith.constant 0 : i32
    return %arg0, %c0_i32 : i32, i32
  }
  func.func @transform_7(%arg0: i32) -> (i32, i32, i32) {
    %c0_i32 = arith.constant 0 : i32
    %c0_i32_0 = arith.constant 0 : i32
    %c0_i32_1 = arith.constant 0 : i32
    return %c0_i32, %arg0, %c0_i32_0 : i32, i32, i32
  }
}

</mosaic_0001>

<llo_original>
// kernel: tpu_custom_call.1
$region0: #{tpu_custom_call.1}
  #allocation0 [shape = 'u32[]', space=smem, size = 0x4, offset = 0x4, fixed_abs, tag = 'smem constant byte address 0x4 - core index']
  #allocation1 [shape = 'u32[144,128]{1,0:T(1,128)}', space=vmem, size = 0x12000, scoped, tag = 'internal scratch']
  %s0 = inlined_call_operand.hbm [shape: f32[2,32], index: 0, kind: input, shape index: {}]
  %s1 = inlined_call_operand.hbm [shape: f32[2,8,32], index: 1, kind: input, shape index: {}]
  %s2 = inlined_call_operand.hbm [shape: f32[32,32], index: 2, kind: input, shape index: {}]
  %s3 = inlined_call_operand.vmem [shape: f32[1,32], index: 3, kind: input, shape index: {}]
  %s4 = inlined_call_operand.hbm [shape: f32[32,64], index: 4, kind: input, shape index: {}]
  %s5 = inlined_call_operand.vmem [shape: f32[1,64], index: 5, kind: input, shape index: {}]
  %s6 = inlined_call_operand.hbm [shape: f32[2,32], index: 6, kind: output, shape index: {0}]
  %s7 = inlined_call_operand.hbm [shape: f32[4,2,8], index: 7, kind: output, shape index: {1}]
  %8 = xla_tuple %s6, %s7
  %s9 = sld [smem:[#allocation0]]
  $region58: #{tpu_custom_call.1} parent=0
    _
  %s11 = ssub.s32 1, %s9
  %s12 = scalar_select 0, %s11, %s9
  $region1: #{tpu_custom_call.1} parent=0
    #allocation2 [shape = 'u8[1024]{0}', space=vmem, size = 0x400, scoped, tag = 'input window, operand 0, single buffered']
    #allocation3 [shape = 's32[1]{0}', space=sflag, size = 0x4, scoped, tag = 'scoped memory for tpu_custom_call.1']
    #allocation4 [shape = 's32[1]{0}', space=sflag, size = 0x4, scoped, tag = 'scoped memory for tpu_custom_call.1']
    #allocation5 [shape = 'u8[8192]{0}', space=vmem, size = 0x2000, scoped, tag = 'input window, operand 1, single buffered']
    #allocation6 [shape = 's32[1]{0}', space=sflag, size = 0x4, scoped, tag = 'scoped memory for tpu_custom_call.1']
    #allocation7 [shape = 'u8[16384]{0}', space=vmem, size = 0x4000, scoped, tag = 'input window, operand 2, single buffered']
    #allocation8 [shape = 'u8[16384]{0}', space=vmem, size = 0x4000, scoped, tag = 'input window, operand 4, single buffered']
    #allocation9 [shape = 's32[1]{0}', space=sflag, size = 0x4, scoped, tag = 'scoped memory for tpu_custom_call.1']
    #allocation10 [shape = 'u8[1024]{0}', space=vmem, size = 0x400, scoped, tag = 'output window, operand 0, single buffered']
    #allocation11 [shape = 'u8[4096]{0}', space=vmem, size = 0x1000, scoped, tag = 'output window, operand 1, single buffered']
    #allocation12 [shape = 's32[1]{0}', space=sflag, size = 0x4, scoped, tag = 'scoped memory for tpu_custom_call.1']
    %13 = vsyncpa [#allocation3], 0
    %14 = vsyncpa [#allocation6], 0
    %15 = vsyncpa [#allocation9], 0
    %16 = vsyncpa [#allocation4], 0
    %17 = vsyncpa [#allocation12], 0
    // Predicated region
    $region2: #{tpu_custom_call.1} parent=1 // pred_check
      _
    $region3: #{tpu_custom_call.1} parent=1 // pred_check_branch
      %19 = sbr.rel (0) target = $region5
    $region4: #{tpu_custom_call.1} parent=1 // pred_region
      %s21 = ssub.s32 32, 32
      %22 = vsyncadd [#allocation3], %s21
      %s24 = sshll.u32 [#allocation2], 4
      %s25 = int_to_ptr.vmem [resolvable:$true] %s24
      %27 = dma.hbm_to_vmem [thread:$0]  %s0, 32, %s25, [#allocation3]
    $region5: #{tpu_custom_call.1} parent=1 // pred_fallthru
      _
    // Predicated region
    $region6: #{tpu_custom_call.1} parent=1 // pred_check
      _
    $region7: #{tpu_custom_call.1} parent=1 // pred_check_branch
      %29 = sbr.rel (0) target = $region9
    $region8: #{tpu_custom_call.1} parent=1 // pred_region
      %s31 = ssub.s32 256, 256
      %32 = vsyncadd [#allocation6], %s31
      %s33 = sshll.u32 [#allocation5], 4
      %s34 = int_to_ptr.vmem [resolvable:$true] %s33
      %39 = dma.hbm_to_vmem [thread:$0]  %s1, 256, %s34, [#allocation6], 128, 128, 8
    $region9: #{tpu_custom_call.1} parent=1 // pred_fallthru
      _
    // Predicated region
    $region10: #{tpu_custom_call.1} parent=1 // pred_check
      _
    $region11: #{tpu_custom_call.1} parent=1 // pred_check_branch
      %41 = sbr.rel (0) target = $region13
    $region12: #{tpu_custom_call.1} parent=1 // pred_region
      %s43 = ssub.s32 512, 512
      %44 = vsyncadd [#allocation6], %s43
      %s45 = sshll.u32 [#allocation7], 4
      %s46 = int_to_ptr.vmem [resolvable:$true] %s45
      %51 = dma.hbm_to_vmem [thread:$0]  %s2, 512, %s46, [#allocation6], 128, 128, 8
    $region13: #{tpu_custom_call.1} parent=1 // pred_fallthru
      _
    // Predicated region
    $region14: #{tpu_custom_call.1} parent=1 // pred_check
      _
    $region15: #{tpu_custom_call.1} parent=1 // pred_check_branch
      %53 = sbr.rel (0) target = $region17
    $region16: #{tpu_custom_call.1} parent=1 // pred_region
      _
    $region17: #{tpu_custom_call.1} parent=1 // pred_fallthru
      _
    // Predicated region
    $region18: #{tpu_custom_call.1} parent=1 // pred_check
      _
    $region19: #{tpu_custom_call.1} parent=1 // pred_check_branch
      %55 = sbr.rel (0) target = $region21
    $region20: #{tpu_custom_call.1} parent=1 // pred_region
      %s57 = ssub.s32 512, 512
      %58 = vsyncadd [#allocation9], %s57
      %s59 = sshll.u32 [#allocation8], 4
      %s60 = int_to_ptr.vmem [resolvable:$true] %s59
      %65 = dma.hbm_to_vmem [thread:$0]  %s4, 512, %s60, [#allocation9], 128, 128, 8
    $region21: #{tpu_custom_call.1} parent=1 // pred_fallthru
      _
    // Predicated region
    $region22: #{tpu_custom_call.1} parent=1 // pred_check
      _
    $region23: #{tpu_custom_call.1} parent=1 // pred_check_branch
      %67 = sbr.rel (0) target = $region25
    $region24: #{tpu_custom_call.1} parent=1 // pred_region
      _
    $region25: #{tpu_custom_call.1} parent=1 // pred_fallthru
      _
    // Predicated region
    $region26: #{tpu_custom_call.1} parent=1 // pred_check
      _
    $region27: #{tpu_custom_call.1} parent=1 // pred_check_branch
      %69 = sbr.rel (0) target = $region29
    $region28: #{tpu_custom_call.1} parent=1 // pred_region
      %70 = dma.done [#allocation3], 32
    $region29: #{tpu_custom_call.1} parent=1 // pred_fallthru
      _
    // Predicated region
    $region30: #{tpu_custom_call.1} parent=1 // pred_check
      _
    $region31: #{tpu_custom_call.1} parent=1 // pred_check_branch
      %72 = sbr.rel (0) target = $region33
    $region32: #{tpu_custom_call.1} parent=1 // pred_region
      %73 = dma.done [#allocation6], 256
    $region33: #{tpu_custom_call.1} parent=1 // pred_fallthru
      _
    // Predicated region
    $region34: #{tpu_custom_call.1} parent=1 // pred_check
      _
    $region35: #{tpu_custom_call.1} parent=1 // pred_check_branch
      %75 = sbr.rel (0) target = $region37
    $region36: #{tpu_custom_call.1} parent=1 // pred_region
      %76 = dma.done [#allocation6], 512
    $region37: #{tpu_custom_call.1} parent=1 // pred_fallthru
      _
    // Predicated region
    $region38: #{tpu_custom_call.1} parent=1 // pred_check
      _
    $region39: #{tpu_custom_call.1} parent=1 // pred_check_branch
      %78 = sbr.rel (0) target = $region41
    $region40: #{tpu_custom_call.1} parent=1 // pred_region
      %79 = dma.done [#allocation9], 512
    $region41: #{tpu_custom_call.1} parent=1 // pred_fallthru
      _
    %v80 = vld [vmem:[#allocation2] sm:$0x3]
    %v81 = vld [vmem:[#allocation7] sm:$0xff]
    %v82 = vld [vmem:[#allocation7 + $0x8] sm:$0xff]
    %v83 = vld [vmem:[#allocation7 + $0x10] sm:$0xff]
    %v84 = vld [vmem:[#allocation7 + $0x18] sm:$0xff]
    %v85 = vld [vmem:[%s3] sm:$0x1]
    %v87 = vlaneseq
    %v88 = vshrl.u32 %v87, 7
    %v89 = vsub.s32 0, %v88
    %v90 = vrot.slane %v85, %v89
    %vm92 = vcmask 261120
    %v94 = vsel %vm92, %v80, 0
    %96 = vmatprep.subr.mxu0 0.0
    %97 = vmatpush1.msra.mxu0 0.0
    %98 = vmatprep.subr.mxu0 0.0
    %99 = vmatpush1.msra.mxu0 0.0
    %100 = vmatprep.subr.mxu0 0.0
    %101 = vmatpush1.msra.mxu0 0.0
    %102 = vmatprep.subr.mxu0 0.0
    %103 = vmatpush1.msra.mxu0 0.0
    %104 = vmatprep.subr.mxu0 0.0
    %105 = vmatpush1.msra.mxu0 0.0
    %106 = vmatprep.subr.mxu0 0.0
    %107 = vmatpush1.msra.mxu0 0.0
    %108 = vmatprep.subr.mxu0 0.0
    %109 = vmatpush1.msra.mxu0 0.0
    %110 = vmatprep.subr.mxu0 0.0
    %111 = vmatpush1.msra.mxu0 0.0
    %112 = vmatprep.subr.mxu0 0.0
    %113 = vmatpush1.msra.mxu0 0.0
    %114 = vmatprep.subr.mxu0 0.0
    %115 = vmatpush1.msra.mxu0 0.0
    %116 = vmatprep.subr.mxu0 0.0
    %117 = vmatpush1.msra.mxu0 0.0
    %118 = vmatprep.subr.mxu0 0.0
    %119 = vmatpush1.msra.mxu0 0.0
    %120 = vmatprep.subr.mxu0 0.0
    %v121 = vand.u32 %v84, 4294901760
    %122 = vmatpush1.msra.mxu0 %v121
    %123 = vmatprep.subr.mxu0 0.0
    %v124 = vand.u32 %v83, 4294901760
    %125 = vmatpush1.msra.mxu0 %v124
    %126 = vmatprep.subr.mxu0 0.0
    %v127 = vand.u32 %v82, 4294901760
    %128 = vmatpush1.msra.mxu0 %v127
    %129 = vmatprep.subr.mxu0 0.0
    %v130 = vand.u32 %v81, 4294901760
    %131 = vmatpush1.msra.mxu0 %v130
    %132 = vmatprep.subr.mxu0 0.0
    %133 = vmatpush2.msra.mxu0 0.0
    %134 = vmatprep.subr.mxu0 0.0
    %135 = vmatpush2.msra.mxu0 0.0
    %136 = vmatprep.subr.mxu0 0.0
    %137 = vmatpush2.msra.mxu0 0.0
    %138 = vmatprep.subr.mxu0 0.0
    %139 = vmatpush2.msra.mxu0 0.0
    %140 = vmatprep.subr.mxu0 0.0
    %141 = vmatpush2.msra.mxu0 0.0
    %142 = vmatprep.subr.mxu0 0.0
    %143 = vmatpush2.msra.mxu0 0.0
    %144 = vmatprep.subr.mxu0 0.0
    %145 = vmatpush2.msra.mxu0 0.0
    %146 = vmatprep.subr.mxu0 0.0
    %147 = vmatpush2.msra.mxu0 0.0
    %148 = vmatprep.subr.mxu0 0.0
    %149 = vmatpush2.msra.mxu0 0.0
    %150 = vmatprep.subr.mxu0 0.0
    %151 = vmatpush2.msra.mxu0 0.0
    %152 = vmatprep.subr.mxu0 0.0
    %153 = vmatpush2.msra.mxu0 0.0
    %154 = vmatprep.subr.mxu0 0.0
    %155 = vmatpush2.msra.mxu0 0.0
    %156 = vmatprep.subr.mxu0 0.0
    %157 = vmatpush2.msra.mxu0 0.0
    %158 = vmatprep.subr.mxu0 0.0
    %159 = vmatpush2.msra.mxu0 0.0
    %160 = vmatprep.subr.mxu0 0.0
    %161 = vmatpush2.msra.mxu0 0.0
    %162 = vmatprep.subr.mxu0 0.0
    %163 = vmatpush2.msra.mxu0 0.0
    %164 = vmatprep.mubr.f32.mxu0 0.0
    %v165 = vand.u32 %v94, 4294901760
    %v166 = vsub.f32 %v94, %v165
    %v167 = vand.u32 %v166, 4294901760
    %v168 = vsub.f32 %v166, %v167
    %v169 = vand.u32 %v168, 4294901760
    %170 = vmatmul.mubr.f32.gmra.mxu0 %v169
    %v171 = vpop.f32.mrf.mxu0
    %v172 = vadd.f32 %v90, %v171
    %v173 = vpop.f32.mrf.mxu0
    %174 = vdwg.mxu0
    %175 = vmatprep.subr.mxu0 0.0
    %176 = vmatpush1.msra.mxu0 0.0
    %177 = vmatprep.subr.mxu0 0.0
    %178 = vmatpush1.msra.mxu0 0.0
    %179 = vmatprep.subr.mxu0 0.0
    %180 = vmatpush1.msra.mxu0 0.0
    %181 = vmatprep.subr.mxu0 0.0
    %182 = vmatpush1.msra.mxu0 0.0
    %183 = vmatprep.subr.mxu0 0.0
    %184 = vmatpush1.msra.mxu0 0.0
    %185 = vmatprep.subr.mxu0 0.0
    %186 = vmatpush1.msra.mxu0 0.0
    %187 = vmatprep.subr.mxu0 0.0
    %188 = vmatpush1.msra.mxu0 0.0
    %189 = vmatprep.subr.mxu0 0.0
    %190 = vmatpush1.msra.mxu0 0.0
    %191 = vmatprep.subr.mxu0 0.0
    %192 = vmatpush1.msra.mxu0 0.0
    %193 = vmatprep.subr.mxu0 0.0
    %194 = vmatpush1.msra.mxu0 0.0
    %195 = vmatprep.subr.mxu0 0.0
    %196 = vmatpush1.msra.mxu0 0.0
    %197 = vmatprep.subr.mxu0 0.0
    %198 = vmatpush1.msra.mxu0 0.0
    %199 = vmatprep.subr.mxu0 0.0
    %v200 = vand.u32 %v84, 4294901760
    %v201 = vsub.f32 %v84, %v200
    %v202 = vand.u32 %v201, 4294901760
    %v203 = vsub.f32 %v201, %v202
    %v204 = vand.u32 %v203, 4294901760
    %205 = vmatpush1.msra.mxu0 %v204
    %206 = vmatprep.subr.mxu0 0.0
    %v207 = vand.u32 %v83, 4294901760
    %v208 = vsub.f32 %v83, %v207
    %v209 = vand.u32 %v208, 4294901760
    %v210 = vsub.f32 %v208, %v209
    %v211 = vand.u32 %v210, 4294901760
    %212 = vmatpush1.msra.mxu0 %v211
    %213 = vmatprep.subr.mxu0 0.0
    %v214 = vand.u32 %v82, 4294901760
    %v215 = vsub.f32 %v82, %v214
    %v216 = vand.u32 %v215, 4294901760
    %v217 = vsub.f32 %v215, %v216
    %v218 = vand.u32 %v217, 4294901760
    %219 = vmatpush1.msra.mxu0 %v218
    %220 = vmatprep.subr.mxu0 0.0
    %v221 = vand.u32 %v81, 4294901760
    %v222 = vsub.f32 %v81, %v221
    %v223 = vand.u32 %v222, 4294901760
    %v224 = vsub.f32 %v222, %v223
    %v225 = vand.u32 %v224, 4294901760
    %226 = vmatpush1.msra.mxu0 %v225
    %227 = vmatprep.subr.mxu0 0.0
    %228 = vmatpush2.msra.mxu0 0.0
    %229 = vmatprep.subr.mxu0 0.0
    %230 = vmatpush2.msra.mxu0 0.0
    %231 = vmatprep.subr.mxu0 0.0
    %232 = vmatpush2.msra.mxu0 0.0
    %233 = vmatprep.subr.mxu0 0.0
    %234 = vmatpush2.msra.mxu0 0.0
    %235 = vmatprep.subr.mxu0 0.0
    %236 = vmatpush2.msra.mxu0 0.0
    %237 = vmatprep.subr.mxu0 0.0
    %238 = vmatpush2.msra.mxu0 0.0
    %239 = vmatprep.subr.mxu0 0.0
    %240 = vmatpush2.msra.mxu0 0.0
    %241 = vmatprep.subr.mxu0 0.0
    %242 = vmatpush2.msra.mxu0 0.0
    %243 = vmatprep.subr.mxu0 0.0
    %244 = vmatpush2.msra.mxu0 0.0
    %245 = vmatprep.subr.mxu0 0.0
    %246 = vmatpush2.msra.mxu0 0.0
    %247 = vmatprep.subr.mxu0 0.0
    %248 = vmatpush2.msra.mxu0 0.0
    %249 = vmatprep.subr.mxu0 0.0
    %250 = vmatpush2.msra.mxu0 0.0
    %251 = vmatprep.subr.mxu0 0.0
    %252 = vmatpush2.msra.mxu0 0.0
    %253 = vmatprep.subr.mxu0 0.0
    %254 = vmatpush2.msra.mxu0 0.0
    %255 = vmatprep.subr.mxu0 0.0
    %256 = vmatpush2.msra.mxu0 0.0
    %257 = vmatprep.subr.mxu0 0.0
    %258 = vmatpush2.msra.mxu0 0.0
    %259 = vmatprep.mubr.f32.mxu0 0.0
    %v260 = vand.u32 %v94, 4294901760
    %261 = vmatmul.mubr.f32.gmra.mxu0 %v260
    %v262 = vpop.f32.mrf.mxu0
    %v263 = vadd.f32 %v172, %v262
    %v264 = vpop.f32.mrf.mxu0
    %265 = vdwg.mxu0
    %266 = vmatprep.subr.mxu0 0.0
    %267 = vmatpush1.msra.mxu0 0.0
    %268 = vmatprep.subr.mxu0 0.0
    %269 = vmatpush1.msra.mxu0 0.0
    %270 = vmatprep.subr.mxu0 0.0
    %271 = vmatpush1.msra.mxu0 0.0
    %272 = vmatprep.subr.mxu0 0.0
    %273 = vmatpush1.msra.mxu0 0.0
    %274 = vmatprep.subr.mxu0 0.0
    %275 = vmatpush1.msra.mxu0 0.0
    %276 = vmatprep.subr.mxu0 0.0
    %277 = vmatpush1.msra.mxu0 0.0
    %278 = vmatprep.subr.mxu0 0.0
    %279 = vmatpush1.msra.mxu0 0.0
    %280 = vmatprep.subr.mxu0 0.0
    %281 = vmatpush1.msra.mxu0 0.0
    %282 = vmatprep.subr.mxu0 0.0
    %283 = vmatpush1.msra.mxu0 0.0
    %284 = vmatprep.subr.mxu0 0.0
    %285 = vmatpush1.msra.mxu0 0.0
    %286 = vmatprep.subr.mxu0 0.0
    %287 = vmatpush1.msra.mxu0 0.0
    %288 = vmatprep.subr.mxu0 0.0
    %289 = vmatpush1.msra.mxu0 0.0
    %290 = vmatprep.subr.mxu0 0.0
    %v291 = vand.u32 %v84, 4294901760
    %v292 = vsub.f32 %v84, %v291
    %293 = vmatpush1.msra.mxu0 %v292
    %294 = vmatprep.subr.mxu0 0.0
    %v295 = vand.u32 %v83, 4294901760
    %v296 = vsub.f32 %v83, %v295
    %297 = vmatpush1.msra.mxu0 %v296
    %298 = vmatprep.subr.mxu0 0.0
    %v299 = vand.u32 %v82, 4294901760
    %v300 = vsub.f32 %v82, %v299
    %301 = vmatpush1.msra.mxu0 %v300
    %302 = vmatprep.subr.mxu0 0.0
    %v303 = vand.u32 %v81, 4294901760
    %v304 = vsub.f32 %v81, %v303
    %305 = vmatpush1.msra.mxu0 %v304
    %306 = vmatprep.subr.mxu0 0.0
    %307 = vmatpush2.msra.mxu0 0.0
    %308 = vmatprep.subr.mxu0 0.0
    %309 = vmatpush2.msra.mxu0 0.0
    %310 = vmatprep.subr.mxu0 0.0
    %311 = vmatpush2.msra.mxu0 0.0
    %312 = vmatprep.subr.mxu0 0.0
    %313 = vmatpush2.msra.mxu0 0.0
    %314 = vmatprep.subr.mxu0 0.0
    %315 = vmatpush2.msra.mxu0 0.0
    %316 = vmatprep.subr.mxu0 0.0
    %317 = vmatpush2.msra.mxu0 0.0
    %318 = vmatprep.subr.mxu0 0.0
    %319 = vmatpush2.msra.mxu0 0.0
    %320 = vmatprep.subr.mxu0 0.0
    %321 = vmatpush2.msra.mxu0 0.0
    %322 = vmatprep.subr.mxu0 0.0
    %323 = vmatpush2.msra.mxu0 0.0
    %324 = vmatprep.subr.mxu0 0.0
    %325 = vmatpush2.msra.mxu0 0.0
    %326 = vmatprep.subr.mxu0 0.0
    %327 = vmatpush2.msra.mxu0 0.0
    %328 = vmatprep.subr.mxu0 0.0
    %329 = vmatpush2.msra.mxu0 0.0
    %330 = vmatprep.subr.mxu0 0.0
    %331 = vmatpush2.msra.mxu0 0.0
    %332 = vmatprep.subr.mxu0 0.0
    %333 = vmatpush2.msra.mxu0 0.0
    %334 = vmatprep.subr.mxu0 0.0
    %335 = vmatpush2.msra.mxu0 0.0
    %336 = vmatprep.subr.mxu0 0.0
    %337 = vmatpush2.msra.mxu0 0.0
    %338 = vmatprep.mubr.f32.mxu0 0.0
    %v339 = vand.u32 %v94, 4294901760
    %v340 = vsub.f32 %v94, %v339
    %341 = vmatmul.mubr.f32.gmra.mxu0 %v340
    %v342 = vpop.f32.mrf.mxu0
    %v343 = vadd.f32 %v263, %v342
    %v344 = vpop.f32.mrf.mxu0
    %345 = vdwg.mxu0
    %346 = vmatprep.subr.mxu0 0.0
    %347 = vmatpush1.msra.mxu0 0.0
    %348 = vmatprep.subr.mxu0 0.0
    %349 = vmatpush1.msra.mxu0 0.0
    %350 = vmatprep.subr.mxu0 0.0
    %351 = vmatpush1.msra.mxu0 0.0
    %352 = vmatprep.subr.mxu0 0.0
    %353 = vmatpush1.msra.mxu0 0.0
    %354 = vmatprep.subr.mxu0 0.0
    %355 = vmatpush1.msra.mxu0 0.0
    %356 = vmatprep.subr.mxu0 0.0
    %357 = vmatpush1.msra.mxu0 0.0
    %358 = vmatprep.subr.mxu0 0.0
    %359 = vmatpush1.msra.mxu0 0.0
    %360 = vmatprep.subr.mxu0 0.0
    %361 = vmatpush1.msra.mxu0 0.0
    %362 = vmatprep.subr.mxu0 0.0
    %363 = vmatpush1.msra.mxu0 0.0
    %364 = vmatprep.subr.mxu0 0.0
    %365 = vmatpush1.msra.mxu0 0.0
    %366 = vmatprep.subr.mxu0 0.0
    %367 = vmatpush1.msra.mxu0 0.0
    %368 = vmatprep.subr.mxu0 0.0
    %369 = vmatpush1.msra.mxu0 0.0
    %370 = vmatprep.subr.mxu0 0.0
    %v371 = vand.u32 %v84, 4294901760
    %372 = vmatpush1.msra.mxu0 %v371
    %373 = vmatprep.subr.mxu0 0.0
    %v374 = vand.u32 %v83, 4294901760
    %375 = vmatpush1.msra.mxu0 %v374
    %376 = vmatprep.subr.mxu0 0.0
    %v377 = vand.u32 %v82, 4294901760
    %378 = vmatpush1.msra.mxu0 %v377
    %379 = vmatprep.subr.mxu0 0.0
    %v380 = vand.u32 %v81, 4294901760
    %381 = vmatpush1.msra.mxu0 %v380
    %382 = vmatprep.subr.mxu0 0.0
    %383 = vmatpush2.msra.mxu0 0.0
    %384 = vmatprep.subr.mxu0 0.0
    %385 = vmatpush2.msra.mxu0 0.0
    %386 = vmatprep.subr.mxu0 0.0
    %387 = vmatpush2.msra.mxu0 0.0
    %388 = vmatprep.subr.mxu0 0.0
    %389 = vmatpush2.msra.mxu0 0.0
    %390 = vmatprep.subr.mxu0 0.0
    %391 = vmatpush2.msra.mxu0 0.0
    %392 = vmatprep.subr.mxu0 0.0
    %393 = vmatpush2.msra.mxu0 0.0
    %394 = vmatprep.subr.mxu0 0.0
    %395 = vmatpush2.msra.mxu0 0.0
    %396 = vmatprep.subr.mxu0 0.0
    %397 = vmatpush2.msra.mxu0 0.0
    %398 = vmatprep.subr.mxu0 0.0
    %399 = vmatpush2.msra.mxu0 0.0
    %400 = vmatprep.subr.mxu0 0.0
    %401 = vmatpush2.msra.mxu0 0.0
    %402 = vmatprep.subr.mxu0 0.0
    %403 = vmatpush2.msra.mxu0 0.0
    %404 = vmatprep.subr.mxu0 0.0
    %405 = vmatpush2.msra.mxu0 0.0
    %406 = vmatprep.subr.mxu0 0.0
    %407 = vmatpush2.msra.mxu0 0.0
    %408 = vmatprep.subr.mxu0 0.0
    %409 = vmatpush2.msra.mxu0 0.0
    %410 = vmatprep.subr.mxu0 0.0
    %411 = vmatpush2.msra.mxu0 0.0
    %412 = vmatprep.subr.mxu0 0.0
    %413 = vmatpush2.msra.mxu0 0.0
    %414 = vmatprep.mubr.f32.mxu0 0.0
    %v415 = vand.u32 %v94, 4294901760
    %v416 = vsub.f32 %v94, %v415
    %v417 = vand.u32 %v416, 4294901760
    %418 = vmatmul.mubr.f32.gmra.mxu0 %v417
    %v419 = vpop.f32.mrf.mxu0
    %v420 = vadd.f32 %v343, %v419
    %v421 = vpop.f32.mrf.mxu0
    %422 = vdwg.mxu0
    %423 = vmatprep.subr.mxu0 0.0
    %424 = vmatpush1.msra.mxu0 0.0
    %425 = vmatprep.subr.mxu0 0.0
    %426 = vmatpush1.msra.mxu0 0.0
    %427 = vmatprep.subr.mxu0 0.0
    %428 = vmatpush1.msra.mxu0 0.0
    %429 = vmatprep.subr.mxu0 0.0
    %430 = vmatpush1.msra.mxu0 0.0
    %431 = vmatprep.subr.mxu0 0.0
    %432 = vmatpush1.msra.mxu0 0.0
    %433 = vmatprep.subr.mxu0 0.0
    %434 = vmatpush1.msra.mxu0 0.0
    %435 = vmatprep.subr.mxu0 0.0
    %436 = vmatpush1.msra.mxu0 0.0
    %437 = vmatprep.subr.mxu0 0.0
    %438 = vmatpush1.msra.mxu0 0.0
    %439 = vmatprep.subr.mxu0 0.0
    %440 = vmatpush1.msra.mxu0 0.0
    %441 = vmatprep.subr.mxu0 0.0
    %442 = vmatpush1.msra.mxu0 0.0
    %443 = vmatprep.subr.mxu0 0.0
    %444 = vmatpush1.msra.mxu0 0.0
    %445 = vmatprep.subr.mxu0 0.0
    %446 = vmatpush1.msra.mxu0 0.0
    %447 = vmatprep.subr.mxu0 0.0
    %v448 = vand.u32 %v84, 4294901760
    %v449 = vsub.f32 %v84, %v448
    %v450 = vand.u32 %v449, 4294901760
    %451 = vmatpush1.msra.mxu0 %v450
    %452 = vmatprep.subr.mxu0 0.0
    %v453 = vand.u32 %v83, 4294901760
    %v454 = vsub.f32 %v83, %v453
    %v455 = vand.u32 %v454, 4294901760
    %456 = vmatpush1.msra.mxu0 %v455
    %457 = vmatprep.subr.mxu0 0.0
    %v458 = vand.u32 %v82, 4294901760
    %v459 = vsub.f32 %v82, %v458
    %v460 = vand.u32 %v459, 4294901760
    %461 = vmatpush1.msra.mxu0 %v460
    %462 = vmatprep.subr.mxu0 0.0
    %v463 = vand.u32 %v81, 4294901760
    %v464 = vsub.f32 %v81, %v463
    %v465 = vand.u32 %v464, 4294901760
    %466 = vmatpush1.msra.mxu0 %v465
    %467 = vmatprep.subr.mxu0 0.0
    %468 = vmatpush2.msra.mxu0 0.0
    %469 = vmatprep.subr.mxu0 0.0
    %470 = vmatpush2.msra.mxu0 0.0
    %471 = vmatprep.subr.mxu0 0.0
    %472 = vmatpush2.msra.mxu0 0.0
    %473 = vmatprep.subr.mxu0 0.0
    %474 = vmatpush2.msra.mxu0 0.0
    %475 = vmatprep.subr.mxu0 0.0
    %476 = vmatpush2.msra.mxu0 0.0
    %477 = vmatprep.subr.mxu0 0.0
    %478 = vmatpush2.msra.mxu0 0.0
    %479 = vmatprep.subr.mxu0 0.0
    %480 = vmatpush2.msra.mxu0 0.0
    %481 = vmatprep.subr.mxu0 0.0
    %482 = vmatpush2.msra.mxu0 0.0
    %483 = vmatprep.subr.mxu0 0.0
    %484 = vmatpush2.msra.mxu0 0.0
    %485 = vmatprep.subr.mxu0 0.0
    %486 = vmatpush2.msra.mxu0 0.0
    %487 = vmatprep.subr.mxu0 0.0
    %488 = vmatpush2.msra.mxu0 0.0
    %489 = vmatprep.subr.mxu0 0.0
    %490 = vmatpush2.msra.mxu0 0.0
    %491 = vmatprep.subr.mxu0 0.0
    %492 = vmatpush2.msra.mxu0 0.0
    %493 = vmatprep.subr.mxu0 0.0
    %494 = vmatpush2.msra.mxu0 0.0
    %495 = vmatprep.subr.mxu0 0.0
    %496 = vmatpush2.msra.mxu0 0.0
    %497 = vmatprep.subr.mxu0 0.0
    %498 = vmatpush2.msra.mxu0 0.0
    %499 = vmatprep.mubr.f32.mxu0 0.0
    %v500 = vand.u32 %v94, 4294901760
    %501 = vmatmul.mubr.f32.gmra.mxu0 %v500
    %v502 = vpop.f32.mrf.mxu0
    %v503 = vadd.f32 %v420, %v502
    %v504 = vpop.f32.mrf.mxu0
    %505 = vdwg.mxu0
    %506 = vmatprep.subr.mxu0 0.0
    %507 = vmatpush1.msra.mxu0 0.0
    %508 = vmatprep.subr.mxu0 0.0
    %509 = vmatpush1.msra.mxu0 0.0
    %510 = vmatprep.subr.mxu0 0.0
    %511 = vmatpush1.msra.mxu0 0.0
    %512 = vmatprep.subr.mxu0 0.0
    %513 = vmatpush1.msra.mxu0 0.0
    %514 = vmatprep.subr.mxu0 0.0
    %515 = vmatpush1.msra.mxu0 0.0
    %516 = vmatprep.subr.mxu0 0.0
    %517 = vmatpush1.msra.mxu0 0.0
    %518 = vmatprep.subr.mxu0 0.0
    %519 = vmatpush1.msra.mxu0 0.0
    %520 = vmatprep.subr.mxu0 0.0
    %521 = vmatpush1.msra.mxu0 0.0
    %522 = vmatprep.subr.mxu0 0.0
    %523 = vmatpush1.msra.mxu0 0.0
    %524 = vmatprep.subr.mxu0 0.0
    %525 = vmatpush1.msra.mxu0 0.0
    %526 = vmatprep.subr.mxu0 0.0
    %527 = vmatpush1.msra.mxu0 0.0
    %528 = vmatprep.subr.mxu0 0.0
    %529 = vmatpush1.msra.mxu0 0.0
    %530 = vmatprep.subr.mxu0 0.0
    %v531 = vand.u32 %v84, 4294901760
    %532 = vmatpush1.msra.mxu0 %v531
    %533 = vmatprep.subr.mxu0 0.0
    %v534 = vand.u32 %v83, 4294901760
    %535 = vmatpush1.msra.mxu0 %v534
    %536 = vmatprep.subr.mxu0 0.0
    %v537 = vand.u32 %v82, 4294901760
    %538 = vmatpush1.msra.mxu0 %v537
    %539 = vmatprep.subr.mxu0 0.0
    %v540 = vand.u32 %v81, 4294901760
    %541 = vmatpush1.msra.mxu0 %v540
    %542 = vmatprep.subr.mxu0 0.0
    %543 = vmatpush2.msra.mxu0 0.0
    %544 = vmatprep.subr.mxu0 0.0
    %545 = vmatpush2.msra.mxu0 0.0
    %546 = vmatprep.subr.mxu0 0.0
    %547 = vmatpush2.msra.mxu0 0.0
    %548 = vmatprep.subr.mxu0 0.0
    %549 = vmatpush2.msra.mxu0 0.0
    %550 = vmatprep.subr.mxu0 0.0
    %551 = vmatpush2.msra.mxu0 0.0
    %552 = vmatprep.subr.mxu0 0.0
    %553 = vmatpush2.msra.mxu0 0.0
    %554 = vmatprep.subr.mxu0 0.0
    %555 = vmatpush2.msra.mxu0 0.0
    %556 = vmatprep.subr.mxu0 0.0
    %557 = vmatpush2.msra.mxu0 0.0
    %558 = vmatprep.subr.mxu0 0.0
    %559 = vmatpush2.msra.mxu0 0.0
    %560 = vmatprep.subr.mxu0 0.0
    %561 = vmatpush2.msra.mxu0 0.0
    %562 = vmatprep.subr.mxu0 0.0
    %563 = vmatpush2.msra.mxu0 0.0
    %564 = vmatprep.subr.mxu0 0.0
    %565 = vmatpush2.msra.mxu0 0.0
    %566 = vmatprep.subr.mxu0 0.0
    %567 = vmatpush2.msra.mxu0 0.0
    %568 = vmatprep.subr.mxu0 0.0
    %569 = vmatpush2.msra.mxu0 0.0
    %570 = vmatprep.subr.mxu0 0.0
    %571 = vmatpush2.msra.mxu0 0.0
    %572 = vmatprep.subr.mxu0 0.0
    %573 = vmatpush2.msra.mxu0 0.0
    %574 = vmatprep.mubr.f32.mxu0 0.0
    %v575 = vand.u32 %v94, 4294901760
    %576 = vmatmul.mubr.f32.gmra.mxu0 %v575
    %v577 = vpop.f32.mrf.mxu0
    %v578 = vadd.f32 %v503, %v577
    %v579 = vpop.f32.mrf.mxu0
    %580 = vdwg.mxu0
    %v581 = vmul.f32 %v578, 0.35355338
    %v582 = vld [vmem:[#allocation5] sm:$0xff]
    %v583 = vld [vmem:[#allocation5 + $0x8] sm:$0xff]
    %v584 = vld [vmem:[#allocation8] sm:$0xff]
    %v585 = vld [vmem:[#allocation8 + $0x8] sm:$0xff]
    %v586 = vld [vmem:[#allocation8 + $0x10] sm:$0xff]
    %v587 = vld [vmem:[#allocation8 + $0x18] sm:$0xff]
    %v588 = vld [vmem:[%s5] sm:$0x1]
    %v590 = vlaneseq
    %v591 = vshrl.u32 %v590, 7
    %v592 = vsub.s32 0, %v591
    %v593 = vrot.slane %v588, %v592
    %v596 = vsel %vm92, %v582, 0
    %v599 = vsel %vm92, %v583, 0
    %601 = vmatprep.subr.mxu0 0.0
    %602 = vmatpush1.msra.mxu0 0.0
    %603 = vmatprep.subr.mxu0 0.0
    %604 = vmatpush1.msra.mxu0 0.0
    %605 = vmatprep.subr.mxu0 0.0
    %606 = vmatpush1.msra.mxu0 0.0
    %607 = vmatprep.subr.mxu0 0.0
    %608 = vmatpush1.msra.mxu0 0.0
    %609 = vmatprep.subr.mxu0 0.0
    %610 = vmatpush1.msra.mxu0 0.0
    %611 = vmatprep.subr.mxu0 0.0
    %612 = vmatpush1.msra.mxu0 0.0
    %613 = vmatprep.subr.mxu0 0.0
    %614 = vmatpush1.msra.mxu0 0.0
    %615 = vmatprep.subr.mxu0 0.0
    %616 = vmatpush1.msra.mxu0 0.0
    %617 = vmatprep.subr.mxu0 0.0
    %618 = vmatpush1.msra.mxu0 0.0
    %619 = vmatprep.subr.mxu0 0.0
    %620 = vmatpush1.msra.mxu0 0.0
    %621 = vmatprep.subr.mxu0 0.0
    %622 = vmatpush1.msra.mxu0 0.0
    %623 = vmatprep.subr.mxu0 0.0
    %624 = vmatpush1.msra.mxu0 0.0
    %625 = vmatprep.subr.mxu0 0.0
    %v626 = vand.u32 %v587, 4294901760
    %627 = vmatpush1.msra.mxu0 %v626
    %628 = vmatprep.subr.mxu0 0.0
    %v629 = vand.u32 %v586, 4294901760
    %630 = vmatpush1.msra.mxu0 %v629
    %631 = vmatprep.subr.mxu0 0.0
    %v632 = vand.u32 %v585, 4294901760
    %633 = vmatpush1.msra.mxu0 %v632
    %634 = vmatprep.subr.mxu0 0.0
    %v635 = vand.u32 %v584, 4294901760
    %636 = vmatpush1.msra.mxu0 %v635
    %637 = vmatprep.subr.mxu0 0.0
    %638 = vmatpush2.msra.mxu0 0.0
    %639 = vmatprep.subr.mxu0 0.0
    %640 = vmatpush2.msra.mxu0 0.0
    %641 = vmatprep.subr.mxu0 0.0
    %642 = vmatpush2.msra.mxu0 0.0
    %643 = vmatprep.subr.mxu0 0.0
    %644 = vmatpush2.msra.mxu0 0.0
    %645 = vmatprep.subr.mxu0 0.0
    %646 = vmatpush2.msra.mxu0 0.0
    %647 = vmatprep.subr.mxu0 0.0
    %648 = vmatpush2.msra.mxu0 0.0
    %649 = vmatprep.subr.mxu0 0.0
    %650 = vmatpush2.msra.mxu0 0.0
    %651 = vmatprep.subr.mxu0 0.0
    %652 = vmatpush2.msra.mxu0 0.0
    %653 = vmatprep.subr.mxu0 0.0
    %654 = vmatpush2.msra.mxu0 0.0
    %655 = vmatprep.subr.mxu0 0.0
    %656 = vmatpush2.msra.mxu0 0.0
    %657 = vmatprep.subr.mxu0 0.0
    %658 = vmatpush2.msra.mxu0 0.0
    %659 = vmatprep.subr.mxu0 0.0
    %660 = vmatpush2.msra.mxu0 0.0
    %661 = vmatprep.subr.mxu0 0.0
    %662 = vmatpush2.msra.mxu0 0.0
    %663 = vmatprep.subr.mxu0 0.0
    %664 = vmatpush2.msra.mxu0 0.0
    %665 = vmatprep.subr.mxu0 0.0
    %666 = vmatpush2.msra.mxu0 0.0
    %667 = vmatprep.subr.mxu0 0.0
    %668 = vmatpush2.msra.mxu0 0.0
    %669 = vmatprep.mubr.f32.mxu0 0.0
    %v670 = vand.u32 %v596, 4294901760
    %v671 = vsub.f32 %v596, %v670
    %v672 = vand.u32 %v671, 4294901760
    %v673 = vsub.f32 %v671, %v672
    %v674 = vand.u32 %v673, 4294901760
    %675 = vmatmul.mubr.f32.gmra.mxu0 %v674
    %v676 = vpop.f32.mrf.mxu0
    %v677 = vadd.f32 %v593, %v676
    %v678 = vpop.f32.mrf.mxu0
    %679 = vmatprep.mubr.f32.mxu0 0.0
    %v680 = vand.u32 %v599, 4294901760
    %v681 = vsub.f32 %v599, %v680
    %v682 = vand.u32 %v681, 4294901760
    %v683 = vsub.f32 %v681, %v682
    %v684 = vand.u32 %v683, 4294901760
    %685 = vmatmul.mubr.f32.gmra.mxu0 %v684
    %v686 = vpop.f32.mrf.mxu0
    %v687 = vadd.f32 %v593, %v686
    %v688 = vpop.f32.mrf.mxu0
    %689 = vdwg.mxu0
    %690 = vmatprep.subr.mxu0 0.0
    %691 = vmatpush1.msra.mxu0 0.0
    %692 = vmatprep.subr.mxu0 0.0
    %693 = vmatpush1.msra.mxu0 0.0
    %694 = vmatprep.subr.mxu0 0.0
    %695 = vmatpush1.msra.mxu0 0.0
    %696 = vmatprep.subr.mxu0 0.0
    %697 = vmatpush1.msra.mxu0 0.0
    %698 = vmatprep.subr.mxu0 0.0
    %699 = vmatpush1.msra.mxu0 0.0
    %700 = vmatprep.subr.mxu0 0.0
    %701 = vmatpush1.msra.mxu0 0.0
    %702 = vmatprep.subr.mxu0 0.0
    %703 = vmatpush1.msra.mxu0 0.0
    %704 = vmatprep.subr.mxu0 0.0
    %705 = vmatpush1.msra.mxu0 0.0
    %706 = vmatprep.subr.mxu0 0.0
    %707 = vmatpush1.msra.mxu0 0.0
    %708 = vmatprep.subr.mxu0 0.0
    %709 = vmatpush1.msra.mxu0 0.0
    %710 = vmatprep.subr.mxu0 0.0
    %711 = vmatpush1.msra.mxu0 0.0
    %712 = vmatprep.subr.mxu0 0.0
    %713 = vmatpush1.msra.mxu0 0.0
    %714 = vmatprep.subr.mxu0 0.0
    %v715 = vand.u32 %v587, 4294901760
    %v716 = vsub.f32 %v587, %v715
    %v717 = vand.u32 %v716, 4294901760
    %v718 = vsub.f32 %v716, %v717
    %v719 = vand.u32 %v718, 4294901760
    %720 = vmatpush1.msra.mxu0 %v719
    %721 = vmatprep.subr.mxu0 0.0
    %v722 = vand.u32 %v586, 4294901760
    %v723 = vsub.f32 %v586, %v722
    %v724 = vand.u32 %v723, 4294901760
    %v725 = vsub.f32 %v723, %v724
    %v726 = vand.u32 %v725, 4294901760
    %727 = vmatpush1.msra.mxu0 %v726
    %728 = vmatprep.subr.mxu0 0.0
    %v729 = vand.u32 %v585, 4294901760
    %v730 = vsub.f32 %v585, %v729
    %v731 = vand.u32 %v730, 4294901760
    %v732 = vsub.f32 %v730, %v731
    %v733 = vand.u32 %v732, 4294901760
    %734 = vmatpush1.msra.mxu0 %v733
    %735 = vmatprep.subr.mxu0 0.0
    %v736 = vand.u32 %v584, 4294901760
    %v737 = vsub.f32 %v584, %v736
    %v738 = vand.u32 %v737, 4294901760
    %v739 = vsub.f32 %v737, %v738
    %v740 = vand.u32 %v739, 4294901760
    %741 = vmatpush1.msra.mxu0 %v740
    %742 = vmatprep.subr.mxu0 0.0
    %743 = vmatpush2.msra.mxu0 0.0
    %744 = vmatprep.subr.mxu0 0.0
    %745 = vmatpush2.msra.mxu0 0.0
    %746 = vmatprep.subr.mxu0 0.0
    %747 = vmatpush2.msra.mxu0 0.0
    %748 = vmatprep.subr.mxu0 0.0
    %749 = vmatpush2.msra.mxu0 0.0
    %750 = vmatprep.subr.mxu0 0.0
    %751 = vmatpush2.msra.mxu0 0.0
    %752 = vmatprep.subr.mxu0 0.0
    %753 = vmatpush2.msra.mxu0 0.0
    %754 = vmatprep.subr.mxu0 0.0
    %755 = vmatpush2.msra.mxu0 0.0
    %756 = vmatprep.subr.mxu0 0.0
    %757 = vmatpush2.msra.mxu0 0.0
    %758 = vmatprep.subr.mxu0 0.0
    %759 = vmatpush2.msra.mxu0 0.0
    %760 = vmatprep.subr.mxu0 0.0
    %761 = vmatpush2.msra.mxu0 0.0
    %762 = vmatprep.subr.mxu0 0.0
    %763 = vmatpush2.msra.mxu0 0.0
    %764 = vmatprep.subr.mxu0 0.0
    %765 = vmatpush2.msra.mxu0 0.0
    %766 = vmatprep.subr.mxu0 0.0
    %767 = vmatpush2.msra.mxu0 0.0
    %768 = vmatprep.subr.mxu0 0.0
    %769 = vmatpush2.msra.mxu0 0.0
    %770 = vmatprep.subr.mxu0 0.0
    %771 = vmatpush2.msra.mxu0 0.0
    %772 = vmatprep.subr.mxu0 0.0
    %773 = vmatpush2.msra.mxu0 0.0
    %774 = vmatprep.mubr.f32.mxu0 0.0
    %v775 = vand.u32 %v596, 4294901760
    %776 = vmatmul.mubr.f32.gmra.mxu0 %v775
    %v777 = vpop.f32.mrf.mxu0
    %v778 = vadd.f32 %v677, %v777
    %v779 = vpop.f32.mrf.mxu0
    %780 = vmatprep.mubr.f32.mxu0 0.0
    %v781 = vand.u32 %v599, 4294901760
    %782 = vmatmul.mubr.f32.gmra.mxu0 %v781
    %v783 = vpop.f32.mrf.mxu0
    %v784 = vadd.f32 %v687, %v783
    %v785 = vpop.f32.mrf.mxu0
    %786 = vdwg.mxu0
    %787 = vmatprep.subr.mxu0 0.0
    %788 = vmatpush1.msra.mxu0 0.0
    %789 = vmatprep.subr.mxu0 0.0
    %790 = vmatpush1.msra.mxu0 0.0
    %791 = vmatprep.subr.mxu0 0.0
    %792 = vmatpush1.msra.mxu0 0.0
    %793 = vmatprep.subr.mxu0 0.0
    %794 = vmatpush1.msra.mxu0 0.0
    %795 = vmatprep.subr.mxu0 0.0
    %796 = vmatpush1.msra.mxu0 0.0
    %797 = vmatprep.subr.mxu0 0.0
    %798 = vmatpush1.msra.mxu0 0.0
    %799 = vmatprep.subr.mxu0 0.0
    %800 = vmatpush1.msra.mxu0 0.0
    %801 = vmatprep.subr.mxu0 0.0
    %802 = vmatpush1.msra.mxu0 0.0
    %803 = vmatprep.subr.mxu0 0.0
    %804 = vmatpush1.msra.mxu0 0.0
    %805 = vmatprep.subr.mxu0 0.0
    %806 = vmatpush1.msra.mxu0 0.0
    %807 = vmatprep.subr.mxu0 0.0
    %808 = vmatpush1.msra.mxu0 0.0
    %809 = vmatprep.subr.mxu0 0.0
    %810 = vmatpush1.msra.mxu0 0.0
    %811 = vmatprep.subr.mxu0 0.0
    %v812 = vand.u32 %v587, 4294901760
    %v813 = vsub.f32 %v587, %v812
    %814 = vmatpush1.msra.mxu0 %v813
    %815 = vmatprep.subr.mxu0 0.0
    %v816 = vand.u32 %v586, 4294901760
    %v817 = vsub.f32 %v586, %v816
    %818 = vmatpush1.msra.mxu0 %v817
    %819 = vmatprep.subr.mxu0 0.0
    %v820 = vand.u32 %v585, 4294901760
    %v821 = vsub.f32 %v585, %v820
    %822 = vmatpush1.msra.mxu0 %v821
    %823 = vmatprep.subr.mxu0 0.0
    %v824 = vand.u32 %v584, 4294901760
    %v825 = vsub.f32 %v584, %v824
    %826 = vmatpush1.msra.mxu0 %v825
    %827 = vmatprep.subr.mxu0 0.0
    %828 = vmatpush2.msra.mxu0 0.0
    %829 = vmatprep.subr.mxu0 0.0
    %830 = vmatpush2.msra.mxu0 0.0
    %831 = vmatprep.subr.mxu0 0.0
    %832 = vmatpush2.msra.mxu0 0.0
    %833 = vmatprep.subr.mxu0 0.0
    %834 = vmatpush2.msra.mxu0 0.0
    %835 = vmatprep.subr.mxu0 0.0
    %836 = vmatpush2.msra.mxu0 0.0
    %837 = vmatprep.subr.mxu0 0.0
    %838 = vmatpush2.msra.mxu0 0.0
    %839 = vmatprep.subr.mxu0 0.0
    %840 = vmatpush2.msra.mxu0 0.0
    %841 = vmatprep.subr.mxu0 0.0
    %842 = vmatpush2.msra.mxu0 0.0
    %843 = vmatprep.subr.mxu0 0.0
    %844 = vmatpush2.msra.mxu0 0.0
    %845 = vmatprep.subr.mxu0 0.0
    %846 = vmatpush2.msra.mxu0 0.0
    %847 = vmatprep.subr.mxu0 0.0
    %848 = vmatpush2.msra.mxu0 0.0
    %849 = vmatprep.subr.mxu0 0.0
    %850 = vmatpush2.msra.mxu0 0.0
    %851 = vmatprep.subr.mxu0 0.0
    %852 = vmatpush2.msra.mxu0 0.0
    %853 = vmatprep.subr.mxu0 0.0
    %854 = vmatpush2.msra.mxu0 0.0
    %855 = vmatprep.subr.mxu0 0.0
    %856 = vmatpush2.msra.mxu0 0.0
    %857 = vmatprep.subr.mxu0 0.0
    %858 = vmatpush2.msra.mxu0 0.0
    %859 = vmatprep.mubr.f32.mxu0 0.0
    %v860 = vand.u32 %v596, 4294901760
    %v861 = vsub.f32 %v596, %v860
    %862 = vmatmul.mubr.f32.gmra.mxu0 %v861
    %v863 = vpop.f32.mrf.mxu0
    %v864 = vadd.f32 %v778, %v863
    %v865 = vpop.f32.mrf.mxu0
    %866 = vmatprep.mubr.f32.mxu0 0.0
    %v867 = vand.u32 %v599, 4294901760
    %v868 = vsub.f32 %v599, %v867
    %869 = vmatmul.mubr.f32.gmra.mxu0 %v868
    %v870 = vpop.f32.mrf.mxu0
    %v871 = vadd.f32 %v784, %v870
    %v872 = vpop.f32.mrf.mxu0
    %873 = vdwg.mxu0
    %874 = vmatprep.subr.mxu0 0.0
    %875 = vmatpush1.msra.mxu0 0.0
    %876 = vmatprep.subr.mxu0 0.0
    %877 = vmatpush1.msra.mxu0 0.0
    %878 = vmatprep.subr.mxu0 0.0
    %879 = vmatpush1.msra.mxu0 0.0
    %880 = vmatprep.subr.mxu0 0.0
    %881 = vmatpush1.msra.mxu0 0.0
    %882 = vmatprep.subr.mxu0 0.0
    %883 = vmatpush1.msra.mxu0 0.0
    %884 = vmatprep.subr.mxu0 0.0
    %885 = vmatpush1.msra.mxu0 0.0
    %886 = vmatprep.subr.mxu0 0.0
    %887 = vmatpush1.msra.mxu0 0.0
    %888 = vmatprep.subr.mxu0 0.0
    %889 = vmatpush1.msra.mxu0 0.0
    %890 = vmatprep.subr.mxu0 0.0
    %891 = vmatpush1.msra.mxu0 0.0
    %892 = vmatprep.subr.mxu0 0.0
    %893 = vmatpush1.msra.mxu0 0.0
    %894 = vmatprep.subr.mxu0 0.0
    %895 = vmatpush1.msra.mxu0 0.0
    %896 = vmatprep.subr.mxu0 0.0
    %897 = vmatpush1.msra.mxu0 0.0
    %898 = vmatprep.subr.mxu0 0.0
    %v899 = vand.u32 %v587, 4294901760
    %900 = vmatpush1.msra.mxu0 %v899
    %901 = vmatprep.subr.mxu0 0.0
    %v902 = vand.u32 %v586, 4294901760
    %903 = vmatpush1.msra.mxu0 %v902
    %904 = vmatprep.subr.mxu0 0.0
    %v905 = vand.u32 %v585, 4294901760
    %906 = vmatpush1.msra.mxu0 %v905
    %907 = vmatprep.subr.mxu0 0.0
    %v908 = vand.u32 %v584, 4294901760
    %909 = vmatpush1.msra.mxu0 %v908
    %910 = vmatprep.subr.mxu0 0.0
    %911 = vmatpush2.msra.mxu0 0.0
    %912 = vmatprep.subr.mxu0 0.0
    %913 = vmatpush2.msra.mxu0 0.0
    %914 = vmatprep.subr.mxu0 0.0
    %915 = vmatpush2.msra.mxu0 0.0
    %916 = vmatprep.subr.mxu0 0.0
    %917 = vmatpush2.msra.mxu0 0.0
    %918 = vmatprep.subr.mxu0 0.0
    %919 = vmatpush2.msra.mxu0 0.0
    %920 = vmatprep.subr.mxu0 0.0
    %921 = vmatpush2.msra.mxu0 0.0
    %922 = vmatprep.subr.mxu0 0.0
    %923 = vmatpush2.msra.mxu0 0.0
    %924 = vmatprep.subr.mxu0 0.0
    %925 = vmatpush2.msra.mxu0 0.0
    %926 = vmatprep.subr.mxu0 0.0
    %927 = vmatpush2.msra.mxu0 0.0
    %928 = vmatprep.subr.mxu0 0.0
    %929 = vmatpush2.msra.mxu0 0.0
    %930 = vmatprep.subr.mxu0 0.0
    %931 = vmatpush2.msra.mxu0 0.0
    %932 = vmatprep.subr.mxu0 0.0
    %933 = vmatpush2.msra.mxu0 0.0
    %934 = vmatprep.subr.mxu0 0.0
    %935 = vmatpush2.msra.mxu0 0.0
    %936 = vmatprep.subr.mxu0 0.0
    %937 = vmatpush2.msra.mxu0 0.0
    %938 = vmatprep.subr.mxu0 0.0
    %939 = vmatpush2.msra.mxu0 0.0
    %940 = vmatprep.subr.mxu0 0.0
    %941 = vmatpush2.msra.mxu0 0.0
    %942 = vmatprep.mubr.f32.mxu0 0.0
    %v943 = vand.u32 %v596, 4294901760
    %v944 = vsub.f32 %v596, %v943
    %v945 = vand.u32 %v944, 4294901760
    %946 = vmatmul.mubr.f32.gmra.mxu0 %v945
    %v947 = vpop.f32.mrf.mxu0
    %v948 = vadd.f32 %v864, %v947
    %v949 = vpop.f32.mrf.mxu0
    %950 = vmatprep.mubr.f32.mxu0 0.0
    %v951 = vand.u32 %v599, 4294901760
    %v952 = vsub.f32 %v599, %v951
    %v953 = vand.u32 %v952, 4294901760
    %954 = vmatmul.mubr.f32.gmra.mxu0 %v953
    %v955 = vpop.f32.mrf.mxu0
    %v956 = vadd.f32 %v871, %v955
    %v957 = vpop.f32.mrf.mxu0
    %958 = vdwg.mxu0
    %959 = vmatprep.subr.mxu0 0.0
    %960 = vmatpush1.msra.mxu0 0.0
    %961 = vmatprep.subr.mxu0 0.0
    %962 = vmatpush1.msra.mxu0 0.0
    %963 = vmatprep.subr.mxu0 0.0
    %964 = vmatpush1.msra.mxu0 0.0
    %965 = vmatprep.subr.mxu0 0.0
    %966 = vmatpush1.msra.mxu0 0.0
    %967 = vmatprep.subr.mxu0 0.0
    %968 = vmatpush1.msra.mxu0 0.0
    %969 = vmatprep.subr.mxu0 0.0
    %970 = vmatpush1.msra.mxu0 0.0
    %971 = vmatprep.subr.mxu0 0.0
    %972 = vmatpush1.msra.mxu0 0.0
    %973 = vmatprep.subr.mxu0 0.0
    %974 = vmatpush1.msra.mxu0 0.0
    %975 = vmatprep.subr.mxu0 0.0
    %976 = vmatpush1.msra.mxu0 0.0
    %977 = vmatprep.subr.mxu0 0.0
    %978 = vmatpush1.msra.mxu0 0.0
    %979 = vmatprep.subr.mxu0 0.0
    %980 = vmatpush1.msra.mxu0 0.0
    %981 = vmatprep.subr.mxu0 0.0
    %982 = vmatpush1.msra.mxu0 0.0
    %983 = vmatprep.subr.mxu0 0.0
    %v984 = vand.u32 %v587, 4294901760
    %v985 = vsub.f32 %v587, %v984
    %v986 = vand.u32 %v985, 4294901760
    %987 = vmatpush1.msra.mxu0 %v986
    %988 = vmatprep.subr.mxu0 0.0
    %v989 = vand.u32 %v586, 4294901760
    %v990 = vsub.f32 %v586, %v989
    %v991 = vand.u32 %v990, 4294901760
    %992 = vmatpush1.msra.mxu0 %v991
    %993 = vmatprep.subr.mxu0 0.0
    %v994 = vand.u32 %v585, 4294901760
    %v995 = vsub.f32 %v585, %v994
    %v996 = vand.u32 %v995, 4294901760
    %997 = vmatpush1.msra.mxu0 %v996
    %998 = vmatprep.subr.mxu0 0.0
    %v999 = vand.u32 %v584, 4294901760
    %v1000 = vsub.f32 %v584, %v999
    %v1001 = vand.u32 %v1000, 4294901760
    %1002 = vmatpush1.msra.mxu0 %v1001
    %1003 = vmatprep.subr.mxu0 0.0
    %1004 = vmatpush2.msra.mxu0 0.0
    %1005 = vmatprep.subr.mxu0 0.0
    %1006 = vmatpush2.msra.mxu0 0.0
    %1007 = vmatprep.subr.mxu0 0.0
    %1008 = vmatpush2.msra.mxu0 0.0
    %1009 = vmatprep.subr.mxu0 0.0
    %1010 = vmatpush2.msra.mxu0 0.0
    %1011 = vmatprep.subr.mxu0 0.0
    %1012 = vmatpush2.msra.mxu0 0.0
    %1013 = vmatprep.subr.mxu0 0.0
    %1014 = vmatpush2.msra.mxu0 0.0
    %1015 = vmatprep.subr.mxu0 0.0
    %1016 = vmatpush2.msra.mxu0 0.0
    %1017 = vmatprep.subr.mxu0 0.0
    %1018 = vmatpush2.msra.mxu0 0.0
    %1019 = vmatprep.subr.mxu0 0.0
    %1020 = vmatpush2.msra.mxu0 0.0
    %1021 = vmatprep.subr.mxu0 0.0
    %1022 = vmatpush2.msra.mxu0 0.0
    %1023 = vmatprep.subr.mxu0 0.0
    %1024 = vmatpush2.msra.mxu0 0.0
    %1025 = vmatprep.subr.mxu0 0.0
    %1026 = vmatpush2.msra.mxu0 0.0
    %1027 = vmatprep.subr.mxu0 0.0
    %1028 = vmatpush2.msra.mxu0 0.0
    %1029 = vmatprep.subr.mxu0 0.0
    %1030 = vmatpush2.msra.mxu0 0.0
    %1031 = vmatprep.subr.mxu0 0.0
    %1032 = vmatpush2.msra.mxu0 0.0
    %1033 = vmatprep.subr.mxu0 0.0
    %1034 = vmatpush2.msra.mxu0 0.0
    %1035 = vmatprep.mubr.f32.mxu0 0.0
    %v1036 = vand.u32 %v596, 4294901760
    %1037 = vmatmul.mubr.f32.gmra.mxu0 %v1036
    %v1038 = vpop.f32.mrf.mxu0
    %v1039 = vadd.f32 %v948, %v1038
    %v1040 = vpop.f32.mrf.mxu0
    %1041 = vmatprep.mubr.f32.mxu0 0.0
    %v1042 = vand.u32 %v599, 4294901760
    %1043 = vmatmul.mubr.f32.gmra.mxu0 %v1042
    %v1044 = vpop.f32.mrf.mxu0
    %v1045 = vadd.f32 %v956, %v1044
    %v1046 = vpop.f32.mrf.mxu0
    %1047 = vdwg.mxu0
    %1048 = vmatprep.subr.mxu0 0.0
    %1049 = vmatpush1.msra.mxu0 0.0
    %1050 = vmatprep.subr.mxu0 0.0
    %1051 = vmatpush1.msra.mxu0 0.0
    %1052 = vmatprep.subr.mxu0 0.0
    %1053 = vmatpush1.msra.mxu0 0.0
    %1054 = vmatprep.subr.mxu0 0.0
    %1055 = vmatpush1.msra.mxu0 0.0
    %1056 = vmatprep.subr.mxu0 0.0
    %1057 = vmatpush1.msra.mxu0 0.0
    %1058 = vmatprep.subr.mxu0 0.0
    %1059 = vmatpush1.msra.mxu0 0.0
    %1060 = vmatprep.subr.mxu0 0.0
    %1061 = vmatpush1.msra.mxu0 0.0
    %1062 = vmatprep.subr.mxu0 0.0
    %1063 = vmatpush1.msra.mxu0 0.0
    %1064 = vmatprep.subr.mxu0 0.0
    %1065 = vmatpush1.msra.mxu0 0.0
    %1066 = vmatprep.subr.mxu0 0.0
    %1067 = vmatpush1.msra.mxu0 0.0
    %1068 = vmatprep.subr.mxu0 0.0
    %1069 = vmatpush1.msra.mxu0 0.0
    %1070 = vmatprep.subr.mxu0 0.0
    %1071 = vmatpush1.msra.mxu0 0.0
    %1072 = vmatprep.subr.mxu0 0.0
    %v1073 = vand.u32 %v587, 4294901760
    %1074 = vmatpush1.msra.mxu0 %v1073
    %1075 = vmatprep.subr.mxu0 0.0
    %v1076 = vand.u32 %v586, 4294901760
    %1077 = vmatpush1.msra.mxu0 %v1076
    %1078 = vmatprep.subr.mxu0 0.0
    %v1079 = vand.u32 %v585, 4294901760
    %1080 = vmatpush1.msra.mxu0 %v1079
    %1081 = vmatprep.subr.mxu0 0.0
    %v1082 = vand.u32 %v584, 4294901760
    %1083 = vmatpush1.msra.mxu0 %v1082
    %1084 = vmatprep.subr.mxu0 0.0
    %1085 = vmatpush2.msra.mxu0 0.0
    %1086 = vmatprep.subr.mxu0 0.0
    %1087 = vmatpush2.msra.mxu0 0.0
    %1088 = vmatprep.subr.mxu0 0.0
    %1089 = vmatpush2.msra.mxu0 0.0
    %1090 = vmatprep.subr.mxu0 0.0
    %1091 = vmatpush2.msra.mxu0 0.0
    %1092 = vmatprep.subr.mxu0 0.0
    %1093 = vmatpush2.msra.mxu0 0.0
    %1094 = vmatprep.subr.mxu0 0.0
    %1095 = vmatpush2.msra.mxu0 0.0
    %1096 = vmatprep.subr.mxu0 0.0
    %1097 = vmatpush2.msra.mxu0 0.0
    %1098 = vmatprep.subr.mxu0 0.0
    %1099 = vmatpush2.msra.mxu0 0.0
    %1100 = vmatprep.subr.mxu0 0.0
    %1101 = vmatpush2.msra.mxu0 0.0
    %1102 = vmatprep.subr.mxu0 0.0
    %1103 = vmatpush2.msra.mxu0 0.0
    %1104 = vmatprep.subr.mxu0 0.0
    %1105 = vmatpush2.msra.mxu0 0.0
    %1106 = vmatprep.subr.mxu0 0.0
    %1107 = vmatpush2.msra.mxu0 0.0
    %1108 = vmatprep.subr.mxu0 0.0
    %1109 = vmatpush2.msra.mxu0 0.0
    %1110 = vmatprep.subr.mxu0 0.0
    %1111 = vmatpush2.msra.mxu0 0.0
    %1112 = vmatprep.subr.mxu0 0.0
    %1113 = vmatpush2.msra.mxu0 0.0
    %1114 = vmatprep.subr.mxu0 0.0
    %1115 = vmatpush2.msra.mxu0 0.0
    %1116 = vmatprep.mubr.f32.mxu0 0.0
    %v1117 = vand.u32 %v596, 4294901760
    %1118 = vmatmul.mubr.f32.gmra.mxu0 %v1117
    %v1119 = vpop.f32.mrf.mxu0
    %v1120 = vadd.f32 %v1039, %v1119
    %v1121 = vpop.f32.mrf.mxu0
    %1122 = vmatprep.mubr.f32.mxu0 0.0
    %v1123 = vand.u32 %v599, 4294901760
    %1124 = vmatmul.mubr.f32.gmra.mxu0 %v1123
    %v1125 = vpop.f32.mrf.mxu0
    %v1126 = vadd.f32 %v1045, %v1125
    %v1127 = vpop.f32.mrf.mxu0
    %1128 = vdwg.mxu0
    %v1131 = vunpack.c.l.s4 1966171168
    %v1132 = vunpack.c.0.s8 %v1131
    %v1133 = vlaneseq
    %v1134 = vshrl.u32 %v1133, 7
    %v1135 = vsub.s32 %v1132, %v1134
    %v1136 = vrot.slane %v581, %v1135
    %v1137 = vcombine.high %v1136, %v1136
    %v1139 = vunpack.c.l.s4 1966171168
    %v1140 = vunpack.c.0.s8 %v1139
    %v1141 = vlaneseq
    %v1142 = vshrl.u32 %v1141, 7
    %v1143 = vsub.s32 %v1140, %v1142
    %v1144 = vrot.slane %v1136, %v1143
    %v1146 = vunpack.c.l.s4 1966171168
    %v1147 = vunpack.c.0.s8 %v1146
    %v1148 = vlaneseq
    %v1149 = vshrl.u32 %v1148, 7
    %v1150 = vsub.s32 %v1147, %v1149
    %v1151 = vrot.slane %v1137, %v1150
    %v1152 = vlaneseq
    %v1153 = vshrl.u32 %v1152, 7
    %v1154 = vsub.s32 0, %v1153
    %v1155 = vrot.slane %v1144, %v1154
    %v1156 = vlaneseq
    %v1157 = vshrl.u32 %v1156, 7
    %v1158 = vsub.s32 0, %v1157
    %v1159 = vrot.slane %v1151, %v1158
    %v1162 = vmul.f32 %v1155, %v1120
    %v1163 = vmul.f32 %v1159, %v1126
    %vm1164 = vcmask 64512
    %v1165 = vsel %vm1164, %v1162, 0.0
    %1166 = vadd.xlane.f32.xlu0 %v1165
    %v1167 = vpop.xlane.xlu0 %1166
    %v1168 = vsel %vm1164, %v1163, 0.0
    %1169 = vadd.xlane.f32.xlu0 %v1168
    %v1170 = vpop.xlane.xlu0 %1169
    %v1173 = vlaneseq
    %v1174 = vand.u32 %v1173, 127
    %v1175 = vlaneseq
    %v1176 = vshrl.u32 %v1175, 7
    %v1177 = vsub.s32 %v1174, %v1176
    %v1178 = vrot.slane %v1167, %v1177
    %v1179 = vlaneseq
    %v1180 = vshrl.u32 %v1179, 7
    %v1181 = vsub.s32 %v1174, %v1180
    %v1182 = vrot.slane %v1170, %v1181
    %vm1183 = vcmask 1041409
    %v1184 = vsel %vm1183, %v1182, %v1178
    %vm1186 = vcmask 58368
    %v1187 = vsel %vm1186, %v1184, -inf
    %1188 = vmax.xlane.f32.xlu0 %v1187
    %v1189 = vpop.xlane.xlu0 %1188
    %v1191 = vlaneseq
    %v1192 = vshrl.u32 %v1191, 7
    %v1193 = vsub.s32 0, %v1192
    %v1194 = vrot.slane %v1189, %v1193
    %v1195 = vlaneseq
    %v1196 = vshrl.u32 %v1195, 7
    %v1197 = vsub.s32 1, %v1196
    %v1198 = vrot.slane %v1189, %v1197
    %v1201 = vsub.f32 %v1167, %v1194
    %v1202 = vsub.f32 %v1170, %v1198
    %v1203 = vmul.f32 %v1201, 1.442695
    %v1204 = vpow.pop %v1203
    %v1205 = vmul.f32 %v1202, 1.442695
    %v1206 = vpow.pop %v1205
    %1209 = vset.pattern.permute.xlu0 0
    %1210 = vperm.xlu0 %1209, %v1204
    %v1211 = vpop.permute.xlu0 %1210
    %1212 = vset.pattern.permute.xlu0 0
    %1213 = vperm.xlu0 %1212, %v1206
    %v1214 = vpop.permute.xlu0 %1213
    %v1215 = vlaneseq
    %v1216 = vshrl.u32 %v1215, 7
    %v1217 = vsub.s32 %v1174, %v1216
    %v1218 = vrot.slane %v1211, %v1217
    %v1219 = vlaneseq
    %v1220 = vshrl.u32 %v1219, 7
    %v1221 = vsub.s32 %v1174, %v1220
    %v1222 = vrot.slane %v1214, %v1221
    %v1223 = vsel %vm1183, %v1222, %v1218
    %v1225 = vsel %vm1186, %v1223, 0.0
    %1226 = vadd.xlane.f32.xlu0 %v1225
    %v1227 = vpop.xlane.xlu0 %1226
    %v1229 = vlaneseq
    %v1230 = vshrl.u32 %v1229, 7
    %v1231 = vsub.s32 0, %v1230
    %v1232 = vrot.slane %v1227, %v1231
    %v1233 = vlaneseq
    %v1234 = vshrl.u32 %v1233, 7
    %v1235 = vsub.s32 1, %v1234
    %v1236 = vrot.slane %v1227, %v1235
    %v1239 = vrcp.pop %v1232
    %v1240 = vmul.f32 %v1204, %v1239
    %v1241 = vrcp.pop %v1236
    %v1242 = vmul.f32 %v1206, %v1241
    %1245 = vset.pattern.permute.xlu0 0
    %1246 = vperm.xlu0 %1245, %v1240
    %v1247 = vpop.permute.xlu0 %1246
    %1248 = vset.pattern.permute.xlu0 0
    %1249 = vperm.xlu0 %1248, %v1242
    %v1250 = vpop.permute.xlu0 %1249
    %v1251 = vlaneseq
    %v1252 = vshrl.u32 %v1251, 7
    %v1253 = vsub.s32 %v1174, %v1252
    %v1254 = vrot.slane %v1247, %v1253
    %v1255 = vlaneseq
    %v1256 = vshrl.u32 %v1255, 7
    %v1257 = vsub.s32 %v1174, %v1256
    %v1258 = vrot.slane %v1250, %v1257
    %v1259 = vsel %vm1183, %v1258, %v1254
    %1261 = vst.msk [vmem:[#allocation11] sm:$0x3] %vm1186, %v1259
    %v1264 = vmul.f32 %v1247, %v1120
    %v1265 = vmul.f32 %v1250, %v1126
    %vm1266 = vcmask 326912
    %v1267 = vsel %vm1266, %v1264, 0.0
    %v1268 = vrot.slane %v1267, 4
    %v1269 = vadd.f32 %v1267, %v1268
    %v1270 = vrot.slane %v1269, 2
    %v1271 = vadd.f32 %v1269, %v1270
    %v1272 = vrot.slane %v1271, 1
    %v1273 = vadd.f32 %v1271, %v1272
    %v1274 = vsel %vm1266, %v1265, 0.0
    %v1275 = vrot.slane %v1274, 4
    %v1276 = vadd.f32 %v1274, %v1275
    %v1277 = vrot.slane %v1276, 2
    %v1278 = vadd.f32 %v1276, %v1277
    %v1279 = vrot.slane %v1278, 1
    %v1280 = vadd.f32 %v1278, %v1279
    %1283 = vrot.lane.b32.xlu0 %v1162, 120
    %v1284 = vpop.permute.xlu0 %1283
    %1285 = vrot.lane.b32.xlu0 %v1163, 120
    %v1286 = vpop.permute.xlu0 %1285
    %v1289 = vsel %vm1164, %v1284, 0.0
    %1290 = vadd.xlane.f32.xlu0 %v1289
    %v1291 = vpop.xlane.xlu0 %1290
    %v1292 = vsel %vm1164, %v1286, 0.0
    %1293 = vadd.xlane.f32.xlu0 %v1292
    %v1294 = vpop.xlane.xlu0 %1293
    %v1297 = vlaneseq
    %v1298 = vshrl.u32 %v1297, 7
    %v1299 = vsub.s32 %v1174, %v1298
    %v1300 = vrot.slane %v1291, %v1299
    %v1301 = vlaneseq
    %v1302 = vshrl.u32 %v1301, 7
    %v1303 = vsub.s32 %v1174, %v1302
    %v1304 = vrot.slane %v1294, %v1303
    %v1305 = vsel %vm1183, %v1304, %v1300
    %v1307 = vsel %vm1186, %v1305, -inf
    %1308 = vmax.xlane.f32.xlu0 %v1307
    %v1309 = vpop.xlane.xlu0 %1308
    %v1311 = vlaneseq
    %v1312 = vshrl.u32 %v1311, 7
    %v1313 = vsub.s32 0, %v1312
    %v1314 = vrot.slane %v1309, %v1313
    %v1315 = vlaneseq
    %v1316 = vshrl.u32 %v1315, 7
    %v1317 = vsub.s32 1, %v1316
    %v1318 = vrot.slane %v1309, %v1317
    %v1321 = vsub.f32 %v1291, %v1314
    %v1322 = vsub.f32 %v1294, %v1318
    %v1323 = vmul.f32 %v1321, 1.442695
    %v1324 = vpow.pop %v1323
    %v1325 = vmul.f32 %v1322, 1.442695
    %v1326 = vpow.pop %v1325
    %1329 = vset.pattern.permute.xlu0 0
    %1330 = vperm.xlu0 %1329, %v1324
    %v1331 = vpop.permute.xlu0 %1330
    %1332 = vset.pattern.permute.xlu0 0
    %1333 = vperm.xlu0 %1332, %v1326
    %v1334 = vpop.permute.xlu0 %1333
    %v1335 = vlaneseq
    %v1336 = vshrl.u32 %v1335, 7
    %v1337 = vsub.s32 %v1174, %v1336
    %v1338 = vrot.slane %v1331, %v1337
    %v1339 = vlaneseq
    %v1340 = vshrl.u32 %v1339, 7
    %v1341 = vsub.s32 %v1174, %v1340
    %v1342 = vrot.slane %v1334, %v1341
    %v1343 = vsel %vm1183, %v1342, %v1338
    %v1345 = vsel %vm1186, %v1343, 0.0
    %1346 = vadd.xlane.f32.xlu0 %v1345
    %v1347 = vpop.xlane.xlu0 %1346
    %v1349 = vlaneseq
    %v1350 = vshrl.u32 %v1349, 7
    %v1351 = vsub.s32 0, %v1350
    %v1352 = vrot.slane %v1347, %v1351
    %v1353 = vlaneseq
    %v1354 = vshrl.u32 %v1353, 7
    %v1355 = vsub.s32 1, %v1354
    %v1356 = vrot.slane %v1347, %v1355
    %v1359 = vrcp.pop %v1352
    %v1360 = vmul.f32 %v1324, %v1359
    %v1361 = vrcp.pop %v1356
    %v1362 = vmul.f32 %v1326, %v1361
    %1365 = vset.pattern.permute.xlu0 0
    %1366 = vperm.xlu0 %1365, %v1360
    %v1367 = vpop.permute.xlu0 %1366
    %1368 = vset.pattern.permute.xlu0 0
    %1369 = vperm.xlu0 %1368, %v1362
    %v1370 = vpop.permute.xlu0 %1369
    %v1371 = vlaneseq
    %v1372 = vshrl.u32 %v1371, 7
    %v1373 = vsub.s32 %v1174, %v1372
    %v1374 = vrot.slane %v1367, %v1373
    %v1375 = vlaneseq
    %v1376 = vshrl.u32 %v1375, 7
    %v1377 = vsub.s32 %v1174, %v1376
    %v1378 = vrot.slane %v1370, %v1377
    %v1379 = vsel %vm1183, %v1378, %v1374
    %s1381 = scalar_lea.vmem [#allocation11], 2
    %1382 = vst.msk [vmem:[%s1381] sm:$0x3] %vm1186, %v1379
    %v1385 = vmul.f32 %v1367, %v1120
    %v1386 = vmul.f32 %v1370, %v1126
    %vm1387 = vcmask 392512
    %v1388 = vsel %vm1387, %v1385, 0.0
    %v1389 = vrot.slane %v1388, 4
    %v1390 = vadd.f32 %v1388, %v1389
    %v1391 = vrot.slane %v1390, 2
    %v1392 = vadd.f32 %v1390, %v1391
    %v1393 = vrot.slane %v1392, 1
    %v1394 = vadd.f32 %v1392, %v1393
    %v1395 = vsel %vm1387, %v1386, 0.0
    %v1396 = vrot.slane %v1395, 4
    %v1397 = vadd.f32 %v1395, %v1396
    %v1398 = vrot.slane %v1397, 2
    %v1399 = vadd.f32 %v1397, %v1398
    %v1400 = vrot.slane %v1399, 1
    %v1401 = vadd.f32 %v1399, %v1400
    %1402 = vrot.lane.b32.xlu0 %v1162, 112
    %v1403 = vpop.permute.xlu0 %1402
    %1404 = vrot.lane.b32.xlu0 %v1163, 112
    %v1405 = vpop.permute.xlu0 %1404
    %v1408 = vsel %vm1164, %v1403, 0.0
    %1409 = vadd.xlane.f32.xlu0 %v1408
    %v1410 = vpop.xlane.xlu0 %1409
    %v1411 = vsel %vm1164, %v1405, 0.0
    %1412 = vadd.xlane.f32.xlu0 %v1411
    %v1413 = vpop.xlane.xlu0 %1412
    %v1416 = vlaneseq
    %v1417 = vshrl.u32 %v1416, 7
    %v1418 = vsub.s32 %v1174, %v1417
    %v1419 = vrot.slane %v1410, %v1418
    %v1420 = vlaneseq
    %v1421 = vshrl.u32 %v1420, 7
    %v1422 = vsub.s32 %v1174, %v1421
    %v1423 = vrot.slane %v1413, %v1422
    %v1424 = vsel %vm1183, %v1423, %v1419
    %v1426 = vsel %vm1186, %v1424, -inf
    %1427 = vmax.xlane.f32.xlu0 %v1426
    %v1428 = vpop.xlane.xlu0 %1427
    %v1430 = vlaneseq
    %v1431 = vshrl.u32 %v1430, 7
    %v1432 = vsub.s32 0, %v1431
    %v1433 = vrot.slane %v1428, %v1432
    %v1434 = vlaneseq
    %v1435 = vshrl.u32 %v1434, 7
    %v1436 = vsub.s32 1, %v1435
    %v1437 = vrot.slane %v1428, %v1436
    %v1440 = vsub.f32 %v1410, %v1433
    %v1441 = vsub.f32 %v1413, %v1437
    %v1442 = vmul.f32 %v1440, 1.442695
    %v1443 = vpow.pop %v1442
    %v1444 = vmul.f32 %v1441, 1.442695
    %v1445 = vpow.pop %v1444
    %1448 = vset.pattern.permute.xlu0 0
    %1449 = vperm.xlu0 %1448, %v1443
    %v1450 = vpop.permute.xlu0 %1449
    %1451 = vset.pattern.permute.xlu0 0
    %1452 = vperm.xlu0 %1451, %v1445
    %v1453 = vpop.permute.xlu0 %1452
    %v1454 = vlaneseq
    %v1455 = vshrl.u32 %v1454, 7
    %v1456 = vsub.s32 %v1174, %v1455
    %v1457 = vrot.slane %v1450, %v1456
    %v1458 = vlaneseq
    %v1459 = vshrl.u32 %v1458, 7
    %v1460 = vsub.s32 %v1174, %v1459
    %v1461 = vrot.slane %v1453, %v1460
    %v1462 = vsel %vm1183, %v1461, %v1457
    %v1464 = vsel %vm1186, %v1462, 0.0
    %1465 = vadd.xlane.f32.xlu0 %v1464
    %v1466 = vpop.xlane.xlu0 %1465
    %v1468 = vlaneseq
    %v1469 = vshrl.u32 %v1468, 7
    %v1470 = vsub.s32 0, %v1469
    %v1471 = vrot.slane %v1466, %v1470
    %v1472 = vlaneseq
    %v1473 = vshrl.u32 %v1472, 7
    %v1474 = vsub.s32 1, %v1473
    %v1475 = vrot.slane %v1466, %v1474
    %v1478 = vrcp.pop %v1471
    %v1479 = vmul.f32 %v1443, %v1478
    %v1480 = vrcp.pop %v1475
    %v1481 = vmul.f32 %v1445, %v1480
    %1484 = vset.pattern.permute.xlu0 0
    %1485 = vperm.xlu0 %1484, %v1479
    %v1486 = vpop.permute.xlu0 %1485
    %1487 = vset.pattern.permute.xlu0 0
    %1488 = vperm.xlu0 %1487, %v1481
    %v1489 = vpop.permute.xlu0 %1488
    %v1490 = vlaneseq
    %v1491 = vshrl.u32 %v1490, 7
    %v1492 = vsub.s32 %v1174, %v1491
    %v1493 = vrot.slane %v1486, %v1492
    %v1494 = vlaneseq
    %v1495 = vshrl.u32 %v1494, 7
    %v1496 = vsub.s32 %v1174, %v1495
    %v1497 = vrot.slane %v1489, %v1496
    %v1498 = vsel %vm1183, %v1497, %v1493
    %s1500 = scalar_lea.vmem [#allocation11], 4
    %1501 = vst.msk [vmem:[%s1500] sm:$0x3] %vm1186, %v1498
    %v1504 = vmul.f32 %v1486, %v1120
    %v1505 = vmul.f32 %v1489, %v1126
    %vm1506 = vcmask 458112
    %v1507 = vsel %vm1506, %v1504, 0.0
    %v1508 = vrot.slane %v1507, 4
    %v1509 = vadd.f32 %v1507, %v1508
    %v1510 = vrot.slane %v1509, 2
    %v1511 = vadd.f32 %v1509, %v1510
    %v1512 = vrot.slane %v1511, 1
    %v1513 = vadd.f32 %v1511, %v1512
    %v1514 = vsel %vm1506, %v1505, 0.0
    %v1515 = vrot.slane %v1514, 4
    %v1516 = vadd.f32 %v1514, %v1515
    %v1517 = vrot.slane %v1516, 2
    %v1518 = vadd.f32 %v1516, %v1517
    %v1519 = vrot.slane %v1518, 1
    %v1520 = vadd.f32 %v1518, %v1519
    %1521 = vrot.lane.b32.xlu0 %v1162, 104
    %v1522 = vpop.permute.xlu0 %1521
    %1523 = vrot.lane.b32.xlu0 %v1163, 104
    %v1524 = vpop.permute.xlu0 %1523
    %v1527 = vsel %vm1164, %v1522, 0.0
    %1528 = vadd.xlane.f32.xlu0 %v1527
    %v1529 = vpop.xlane.xlu0 %1528
    %v1530 = vsel %vm1164, %v1524, 0.0
    %1531 = vadd.xlane.f32.xlu0 %v1530
    %v1532 = vpop.xlane.xlu0 %1531
    %v1535 = vlaneseq
    %v1536 = vshrl.u32 %v1535, 7
    %v1537 = vsub.s32 %v1174, %v1536
    %v1538 = vrot.slane %v1529, %v1537
    %v1539 = vlaneseq
    %v1540 = vshrl.u32 %v1539, 7
    %v1541 = vsub.s32 %v1174, %v1540
    %v1542 = vrot.slane %v1532, %v1541
    %v1543 = vsel %vm1183, %v1542, %v1538
    %v1545 = vsel %vm1186, %v1543, -inf
    %1546 = vmax.xlane.f32.xlu0 %v1545
    %v1547 = vpop.xlane.xlu0 %1546
    %v1549 = vlaneseq
    %v1550 = vshrl.u32 %v1549, 7
    %v1551 = vsub.s32 0, %v1550
    %v1552 = vrot.slane %v1547, %v1551
    %v1553 = vlaneseq
    %v1554 = vshrl.u32 %v1553, 7
    %v1555 = vsub.s32 1, %v1554
    %v1556 = vrot.slane %v1547, %v1555
    %v1559 = vsub.f32 %v1529, %v1552
    %v1560 = vsub.f32 %v1532, %v1556
    %v1561 = vmul.f32 %v1559, 1.442695
    %v1562 = vpow.pop %v1561
    %v1563 = vmul.f32 %v1560, 1.442695
    %v1564 = vpow.pop %v1563
    %1567 = vset.pattern.permute.xlu0 0
    %1568 = vperm.xlu0 %1567, %v1562
    %v1569 = vpop.permute.xlu0 %1568
    %1570 = vset.pattern.permute.xlu0 0
    %1571 = vperm.xlu0 %1570, %v1564
    %v1572 = vpop.permute.xlu0 %1571
    %v1573 = vlaneseq
    %v1574 = vshrl.u32 %v1573, 7
    %v1575 = vsub.s32 %v1174, %v1574
    %v1576 = vrot.slane %v1569, %v1575
    %v1577 = vlaneseq
    %v1578 = vshrl.u32 %v1577, 7
    %v1579 = vsub.s32 %v1174, %v1578
    %v1580 = vrot.slane %v1572, %v1579
    %v1581 = vsel %vm1183, %v1580, %v1576
    %v1583 = vsel %vm1186, %v1581, 0.0
    %1584 = vadd.xlane.f32.xlu0 %v1583
    %v1585 = vpop.xlane.xlu0 %1584
    %v1587 = vlaneseq
    %v1588 = vshrl.u32 %v1587, 7
    %v1589 = vsub.s32 0, %v1588
    %v1590 = vrot.slane %v1585, %v1589
    %v1591 = vlaneseq
    %v1592 = vshrl.u32 %v1591, 7
    %v1593 = vsub.s32 1, %v1592
    %v1594 = vrot.slane %v1585, %v1593
    %v1597 = vrcp.pop %v1590
    %v1598 = vmul.f32 %v1562, %v1597
    %v1599 = vrcp.pop %v1594
    %v1600 = vmul.f32 %v1564, %v1599
    %1603 = vset.pattern.permute.xlu0 0
    %1604 = vperm.xlu0 %1603, %v1598
    %v1605 = vpop.permute.xlu0 %1604
    %1606 = vset.pattern.permute.xlu0 0
    %1607 = vperm.xlu0 %1606, %v1600
    %v1608 = vpop.permute.xlu0 %1607
    %v1609 = vlaneseq
    %v1610 = vshrl.u32 %v1609, 7
    %v1611 = vsub.s32 %v1174, %v1610
    %v1612 = vrot.slane %v1605, %v1611
    %v1613 = vlaneseq
    %v1614 = vshrl.u32 %v1613, 7
    %v1615 = vsub.s32 %v1174, %v1614
    %v1616 = vrot.slane %v1608, %v1615
    %v1617 = vsel %vm1183, %v1616, %v1612
    %s1619 = scalar_lea.vmem [#allocation11], 6
    %1620 = vst.msk [vmem:[%s1619] sm:$0x3] %vm1186, %v1617
    %v1623 = vmul.f32 %v1605, %v1120
    %v1624 = vmul.f32 %v1608, %v1126
    %vm1625 = vcmask 523712
    %v1626 = vsel %vm1625, %v1623, 0.0
    %v1627 = vrot.slane %v1626, 4
    %v1628 = vadd.f32 %v1626, %v1627
    %v1629 = vrot.slane %v1628, 2
    %v1630 = vadd.f32 %v1628, %v1629
    %v1631 = vrot.slane %v1630, 1
    %v1632 = vadd.f32 %v1630, %v1631
    %v1633 = vsel %vm1625, %v1624, 0.0
    %v1634 = vrot.slane %v1633, 4
    %v1635 = vadd.f32 %v1633, %v1634
    %v1636 = vrot.slane %v1635, 2
    %v1637 = vadd.f32 %v1635, %v1636
    %v1638 = vrot.slane %v1637, 1
    %v1639 = vadd.f32 %v1637, %v1638
    %v1642 = vsel %vm1183, %v1280, %v1273
    %1643 = vrot.lane.b32.xlu0 %v1642, 96
    %v1644 = vpop.permute.xlu0 %1643
    %v1648 = vsel %vm1183, %v1401, %v1394
    %1649 = vrot.lane.b32.xlu0 %v1648, 96
    %v1650 = vpop.permute.xlu0 %1649
    %v1654 = vsel %vm1183, %v1520, %v1513
    %1655 = vrot.lane.b32.xlu0 %v1654, 96
    %v1656 = vpop.permute.xlu0 %1655
    %v1660 = vsel %vm1183, %v1639, %v1632
    %1661 = vrot.lane.b32.xlu0 %v1660, 96
    %v1662 = vpop.permute.xlu0 %1661
    %v1664 = vsel %vm1164, %v1644, %v1650
    %vm1665 = vcmask 130048
    %v1666 = vsel %vm1665, %v1664, %v1656
    %vm1667 = vcmask 195584
    %v1668 = vsel %vm1667, %v1666, %v1662
    %vm1669 = vcmask 254976
    %1670 = vst.msk [vmem:[#allocation10] sm:$0x3] %vm1669, %v1668
    // Predicated region
    $region42: #{tpu_custom_call.1} parent=1 // pred_check
      _
    $region43: #{tpu_custom_call.1} parent=1 // pred_check_branch
      %1672 = sbr.rel (0) target = $region45
    $region44: #{tpu_custom_call.1} parent=1 // pred_region
      %s1674 = ssub.s32 32, 32
      %1675 = vsyncadd [#allocation4], %s1674
      %s1677 = sshll.u32 [#allocation10], 4
      %s1678 = int_to_ptr.vmem [resolvable:$true] %s1677
      %1680 = dma.vmem_to_hbm [thread:$0]  %s1678, 32, %s6, [#allocation4]
    $region45: #{tpu_custom_call.1} parent=1 // pred_fallthru
      _
    // Predicated region
    $region46: #{tpu_custom_call.1} parent=1 // pred_check
      _
    $region47: #{tpu_custom_call.1} parent=1 // pred_check_branch
      %1682 = sbr.rel (0) target = $region49
    $region48: #{tpu_custom_call.1} parent=1 // pred_region
      %s1684 = ssub.s32 128, 128
      %1685 = vsyncadd [#allocation12], %s1684
      %s1686 = sshll.u32 [#allocation11], 4
      %s1687 = int_to_ptr.vmem [resolvable:$true] %s1686
      %1692 = dma.vmem_to_hbm [thread:$0]  %s1687, 128, %s7, [#allocation12], 32, 32, 2
    $region49: #{tpu_custom_call.1} parent=1 // pred_fallthru
      _
    // Predicated region
    $region50: #{tpu_custom_call.1} parent=1 // pred_check
      _
    $region51: #{tpu_custom_call.1} parent=1 // pred_check_branch
      %1694 = sbr.rel (0) target = $region53
    $region52: #{tpu_custom_call.1} parent=1 // pred_region
      %1695 = dma.done [#allocation4], 32
    $region53: #{tpu_custom_call.1} parent=1 // pred_fallthru
      _
    // Predicated region
    $region54: #{tpu_custom_call.1} parent=1 // pred_check
      _
    $region55: #{tpu_custom_call.1} parent=1 // pred_check_branch
      %1697 = sbr.rel (0) target = $region57
    $region56: #{tpu_custom_call.1} parent=1 // pred_region
      %1698 = dma.done [#allocation12], 128
    $region57: #{tpu_custom_call.1} parent=1 // pred_fallthru
      _
    %1699 = vsyncpa [#allocation3], 1
    %1700 = vsyncpa [#allocation6], 1
    %1701 = vsyncpa [#allocation9], 1
    %1702 = vsyncpa [#allocation4], 1
    %1703 = vsyncpa [#allocation12], 1

</llo_original>
